<compile_context>
chip_gen: v6e
topology: v6e:2x2x1
jax: 0.10.0
libtpu: 0.0.40
codegen_flags: <defaults>
</compile_context>

<pallas_src>
import functools

import jax
import jax.numpy as jnp
from jax.experimental import pallas as pl
from jax.experimental.pallas import tpu as pltpu


def _cast(a, dt):
    return a if dt is None else a.astype(dt)


def self_attention_kernel(x_ref, wq_ref, wk_ref, wv_ref, wu_ref, bu_ref,
                          o_ref, *, heads, k, t, bb, mxu_dtype):
    # x_ref:  (bb*t, k)      rows of `bb` fused batch elements
    # wq_ref: (k, heads*k)   pre-transposed, pre-scaled by 1/sqrt(k)
    # wk_ref: (k, heads*k)   pre-transposed
    # wv_ref: (k, heads*k)   pre-transposed
    # wu_ref: (heads*k, k)   pre-transposed unifyheads.weight
    # bu_ref: (1, k)         unifyheads.bias (kept f32)
    x = x_ref[...]

    # Fused QKV projections: single wide matmuls, f32 accumulation.
    q = jnp.dot(x, wq_ref[...], preferred_element_type=jnp.float32)   # (bb*t, H*k)
    kx = jnp.dot(x, wk_ref[...], preferred_element_type=jnp.float32)  # (bb*t, H*k)
    v = jnp.dot(x, wv_ref[...], preferred_element_type=jnp.float32)   # (bb*t, H*k)

    g = bb * heads

    def to_head_major(a):
        # (bb*t, H*k) -> (bb*H, t, k): one relayout per tensor; every per-head
        # (t, k) tile is then lane-0 aligned (no 32-lane-offset slices).
        return a.reshape(bb, t, heads, k).transpose(0, 2, 1, 3).reshape(g, t, k)

    q3 = _cast(to_head_major(q), mxu_dtype)
    k3 = _cast(to_head_major(kx), mxu_dtype)
    v3 = _cast(to_head_major(v), mxu_dtype)

    # Batched scores over the fused (batch*head) axis; q already carries the
    # 1/sqrt(k) scale folded into the weights.
    s = jnp.einsum('gtd,gsd->gts', q3, k3,
                   preferred_element_type=jnp.float32)                # (g, t, t)

    # Numerically-stable softmax; exact normalization (the approximate EUP
    # reciprocal previously broke the 2e-3 check).
    s = s - jnp.max(s, axis=-1, keepdims=True)
    p = jnp.exp(s)
    p = p / jnp.sum(p, axis=-1, keepdims=True)

    o3 = jnp.einsum('gts,gsd->gtd', _cast(p, mxu_dtype), v3,
                    preferred_element_type=jnp.float32)               # (g, t, k)

    # Back to (bb*t, H*k) and a single fused output projection + bias.
    slab = (o3.reshape(bb, heads, t, k)
              .transpose(0, 2, 1, 3)
              .reshape(bb * t, heads * k))
    y = jnp.dot(_cast(slab, mxu_dtype), wu_ref[...],
                preferred_element_type=jnp.float32) + bu_ref[...]
    o_ref[...] = y.astype(o_ref.dtype)


def self_attention(x, wq, wk, wv, wu, bu, heads, *, batch_block=None,
                   mxu_dtype=None):
    """SelfAttention forward. Weights are in PyTorch nn.Linear layout:
    wq/wk/wv: (heads*k, k), wu: (k, heads*k), bu: (k,).

    Pass mxu_dtype=jnp.bfloat16 on v6e/v7x for higher MXU throughput and
    halved weight/activation DMA (f32 accumulation kept in-kernel)."""
    b, t, k = x.shape
    hk = heads * k
    out_dtype = x.dtype

    if batch_block is None:
        # Target ~256 MXU rows per grid step (v6e/v7x 256x256 tiles; 128 would
        # suffice on v5e), but keep >= 2 grid steps when possible so both v7x
        # TensorCores receive work under dimension_semantics=("parallel",).
        batch_block = min(b, max(1, 256 // t))
        if b // batch_block < 2 and b >= 2:
            batch_block = max(1, b // 2)
    while b % batch_block != 0:
        batch_block -= 1
    bb = batch_block
    if (bb * t) % 8 != 0 and bb != b:
        bb = b  # fall back to block dims == full dims if (8, .) tiling breaks

    # One-time layout / scale work hoisted out of the kernel.
    inv_sqrt_k = jnp.asarray(1.0 / (float(k) ** 0.5), wq.dtype)
    wq_t = (wq * inv_sqrt_k).T          # (k, hk), 1/sqrt(k) folded in
    wk_t = wk.T                         # (k, hk)
    wv_t = wv.T                         # (k, hk)
    wu_t = wu.T                         # (hk, k)
    bu2 = bu.reshape(1, k).astype(jnp.float32)
    x2 = x.reshape(b * t, k)

    if mxu_dtype is not None:
        # Cast once in the wrapper: halves DMA'd bytes and VMEM residency.
        x2 = x2.astype(mxu_dtype)
        wq_t = wq_t.astype(mxu_dtype)
        wk_t = wk_t.astype(mxu_dtype)
        wv_t = wv_t.astype(mxu_dtype)
        wu_t = wu_t.astype(mxu_dtype)

    kernel = functools.partial(self_attention_kernel, heads=heads, k=k, t=t,
                               bb=bb, mxu_dtype=mxu_dtype)

    out = pl.pallas_call(
        kernel,
        out_shape=jax.ShapeDtypeStruct((b * t, k), out_dtype),
        grid=(b // bb,),
        in_specs=[
            pl.BlockSpec((bb * t, k), lambda i: (i, 0)),   # x rows
            pl.BlockSpec((k, hk), lambda i: (0, 0)),       # w_q^T (scaled)
            pl.BlockSpec((k, hk), lambda i: (0, 0)),       # w_k^T
            pl.BlockSpec((k, hk), lambda i: (0, 0)),       # w_v^T
            pl.BlockSpec((hk, k), lambda i: (0, 0)),       # unifyheads.weight^T
            pl.BlockSpec((1, k), lambda i: (0, 0)),        # unifyheads.bias
        ],
        out_specs=pl.BlockSpec((bb * t, k), lambda i: (i, 0)),
        compiler_params=pltpu.CompilerParams(
            dimension_semantics=("parallel",),
            vmem_limit_bytes=32 * 1024 * 1024),
    )(x2, wq_t, wk_t, wv_t, wu_t, bu2)

    return out.reshape(b, t, k)


def self_attention_ref(x, wq, wk, wv, wu, bu, heads):
    """Plain-JAX reference mirroring the PyTorch forward()."""
    b, t, k = x.shape
    h = heads
    q = (x @ wq.T).reshape(b, t, h, k).transpose(0, 2, 1, 3)   # (b,h,t,k)
    kk = (x @ wk.T).reshape(b, t, h, k).transpose(0, 2, 1, 3)
    v = (x @ wv.T).reshape(b, t, h, k).transpose(0, 2, 1, 3)
    q = q / (k ** 0.25)
    kk = kk / (k ** 0.25)
    w = jnp.einsum('bhtd,bhsd->bhts', q, kk)
    w = jax.nn.softmax(w, axis=-1)
    out = jnp.einsum('bhts,bhsd->bhtd', w, v)                  # (b,h,t,k)
    out = out.transpose(0, 2, 1, 3).reshape(b, t, h * k)
    return out @ wu.T + bu


if __name__ == "__main__":
    B, T, K, H = 2, 8, 32, 8

    key = jax.random.PRNGKey(0)
    kx_, kq, kk_, kv, ku, kb = jax.random.split(key, 6)

    x = jax.random.normal(kx_, (B, T, K), dtype=jnp.float32)
    # nn.Linear-style init scale ~ 1/sqrt(fan_in).
    wq = jax.random.normal(kq, (H * K, K), dtype=jnp.float32) * (1.0 / K ** 0.5)
    wk = jax.random.normal(kk_, (H * K, K), dtype=jnp.float32) * (1.0 / K ** 0.5)
    wv = jax.random.normal(kv, (H * K, K), dtype=jnp.float32) * (1.0 / K ** 0.5)
    wu = jax.random.normal(ku, (K, H * K), dtype=jnp.float32) * (1.0 / (H * K) ** 0.5)
    bu = jax.random.normal(kb, (K,), dtype=jnp.float32) * 0.01

    ref = self_attention_ref(x, wq, wk, wv, wu, bu, H)

    # Strict check on the f32 path (exact softmax normalization).
    out = jax.block_until_ready(self_attention(x, wq, wk, wv, wu, bu, H))
    assert out.shape == (B, T, K)
    assert jnp.allclose(out, ref, atol=2e-3, rtol=2e-3), "f32 mismatch vs reference"

    # bf16 MXU-input path (review recommendation for v6e/v7x); loose norm-based
    # check since inputs/weights are rounded to bf16 (f32 accumulation kept).
    out_bf16 = jax.block_until_ready(
        self_attention(x, wq, wk, wv, wu, bu, H, mxu_dtype=jnp.bfloat16))
    rel_err = jnp.linalg.norm(out_bf16 - ref) / jnp.linalg.norm(ref)
    assert float(rel_err) < 0.1, "bf16 path deviates too much from reference"

    print("KERNEL_OK")
</pallas_src>

<mosaic_0001>
module attributes {stable_mosaic.version = 11 : i64} {
  func.func @self_attention_kernel(%arg0: i32, %arg1: memref<8x32xf32, #tpu.memory_space<vmem>>, %arg2: memref<32x256xf32, #tpu.memory_space<vmem>>, %arg3: memref<32x256xf32, #tpu.memory_space<vmem>>, %arg4: memref<32x256xf32, #tpu.memory_space<vmem>>, %arg5: memref<256x32xf32, #tpu.memory_space<vmem>>, %arg6: memref<1x32xf32, #tpu.memory_space<vmem>>, %arg7: memref<8x32xf32, #tpu.memory_space<vmem>>) attributes {dimension_semantics = [#tpu.dimension_semantics<parallel>], iteration_bounds = array<i64: 2>, scalar_prefetch = 0 : i64, scratch_operands = 0 : i64, tpu.core_type = #tpu.core_type<tc>, window_params = [{transform_indices = @transform_0, window_bounds = array<i64: 8, 32>}, {pipeline_mode = #tpu.pipeline_mode<synchronous>, transform_indices = @transform_1, window_bounds = array<i64: 32, 256>}, {pipeline_mode = #tpu.pipeline_mode<synchronous>, transform_indices = @transform_2, window_bounds = array<i64: 32, 256>}, {pipeline_mode = #tpu.pipeline_mode<synchronous>, transform_indices = @transform_3, window_bounds = array<i64: 32, 256>}, {pipeline_mode = #tpu.pipeline_mode<synchronous>, transform_indices = @transform_4, window_bounds = array<i64: 256, 32>}, {pipeline_mode = #tpu.pipeline_mode<synchronous>, transform_indices = @transform_5, window_bounds = array<i64: 1, 32>}, {transform_indices = @transform_6, window_bounds = array<i64: 8, 32>}]} {
    %c0 = arith.constant 0 : index
    %c0_0 = arith.constant 0 : index
    %0 = vector.load %arg1[%c0, %c0_0] : memref<8x32xf32, #tpu.memory_space<vmem>>, vector<8x32xf32>
    %c0_1 = arith.constant 0 : index
    %c0_2 = arith.constant 0 : index
    %1 = vector.load %arg2[%c0_1, %c0_2] : memref<32x256xf32, #tpu.memory_space<vmem>>, vector<32x256xf32>
    %cst = arith.constant dense<0.000000e+00> : vector<8x256xf32>
    %2 = tpu.matmul %0, %1, %cst {dimension_numbers = #tpu.dot_dimension_numbers<[1], [0], [0], [1], [0, 0, 1, 1], [], []>} : vector<8x32xf32>, vector<32x256xf32>, vector<8x256xf32> -> vector<8x256xf32>
    %c0_3 = arith.constant 0 : index
    %c0_4 = arith.constant 0 : index
    %3 = vector.load %arg3[%c0_3, %c0_4] : memref<32x256xf32, #tpu.memory_space<vmem>>, vector<32x256xf32>
    %cst_5 = arith.constant dense<0.000000e+00> : vector<8x256xf32>
    %4 = tpu.matmul %0, %3, %cst_5 {dimension_numbers = #tpu.dot_dimension_numbers<[1], [0], [0], [1], [0, 0, 1, 1], [], []>} : vector<8x32xf32>, vector<32x256xf32>, vector<8x256xf32> -> vector<8x256xf32>
    %c0_6 = arith.constant 0 : index
    %c0_7 = arith.constant 0 : index
    %5 = vector.load %arg4[%c0_6, %c0_7] : memref<32x256xf32, #tpu.memory_space<vmem>>, vector<32x256xf32>
    %cst_8 = arith.constant dense<0.000000e+00> : vector<8x256xf32>
    %6 = tpu.matmul %0, %5, %cst_8 {dimension_numbers = #tpu.dot_dimension_numbers<[1], [0], [0], [1], [0, 0, 1, 1], [], []>} : vector<8x32xf32>, vector<32x256xf32>, vector<8x256xf32> -> vector<8x256xf32>
    %7 = vector.shape_cast %2 : vector<8x256xf32> to vector<1x8x8x32xf32>
    %8 = tpu.transpose %7, [0, 2, 1, 3] : vector<1x8x8x32xf32> -> vector<1x8x8x32xf32>
    %9 = vector.shape_cast %8 : vector<1x8x8x32xf32> to vector<8x8x32xf32>
    %10 = vector.shape_cast %4 : vector<8x256xf32> to vector<1x8x8x32xf32>
    %11 = tpu.transpose %10, [0, 2, 1, 3] : vector<1x8x8x32xf32> -> vector<1x8x8x32xf32>
    %12 = vector.shape_cast %11 : vector<1x8x8x32xf32> to vector<8x8x32xf32>
    %13 = vector.shape_cast %6 : vector<8x256xf32> to vector<1x8x8x32xf32>
    %14 = tpu.transpose %13, [0, 2, 1, 3] : vector<1x8x8x32xf32> -> vector<1x8x8x32xf32>
    %15 = vector.shape_cast %14 : vector<1x8x8x32xf32> to vector<8x8x32xf32>
    "tpu.trace_start"() <{level = 10 : i32, message = "gtd,gsd->gts"}> : () -> ()
    %cst_9 = arith.constant dense<0.000000e+00> : vector<8x8x8xf32>
    %16 = tpu.matmul %9, %12, %cst_9 {dimension_numbers = #tpu.dot_dimension_numbers<[2], [2], [1], [1], [0, 0, 0, 1, 1, 1], [0], [0]>} : vector<8x8x32xf32>, vector<8x8x32xf32>, vector<8x8x8xf32> -> vector<8x8x8xf32>
    "tpu.trace_stop"() : () -> ()
    %cst_10 = arith.constant dense<0xFF800000> : vector<8x8xf32>
    %17 = vector.multi_reduction <maximumf>, %16, %cst_10 [2] : vector<8x8x8xf32> to vector<8x8xf32>
    %18 = vector.shape_cast %17 : vector<8x8xf32> to vector<8x8x1xf32>
    %19 = vector.broadcast %18 : vector<8x8x1xf32> to vector<8x8x8xf32>
    %20 = arith.subf %16, %19 : vector<8x8x8xf32>
    %21 = math.exp %20 : vector<8x8x8xf32>
    %cst_11 = arith.constant dense<0.000000e+00> : vector<8x8xf32>
    %22 = vector.multi_reduction <add>, %21, %cst_11 [2] : vector<8x8x8xf32> to vector<8x8xf32>
    %23 = vector.shape_cast %22 : vector<8x8xf32> to vector<8x8x1xf32>
    %24 = vector.broadcast %23 : vector<8x8x1xf32> to vector<8x8x8xf32>
    %25 = arith.divf %21, %24 : vector<8x8x8xf32>
    "tpu.trace_start"() <{level = 10 : i32, message = "gts,gsd->gtd"}> : () -> ()
    %cst_12 = arith.constant dense<0.000000e+00> : vector<8x8x32xf32>
    %26 = tpu.matmul %25, %15, %cst_12 {dimension_numbers = #tpu.dot_dimension_numbers<[2], [1], [1], [2], [0, 0, 0, 1, 1, 2], [0], [0]>} : vector<8x8x8xf32>, vector<8x8x32xf32>, vector<8x8x32xf32> -> vector<8x8x32xf32>
    "tpu.trace_stop"() : () -> ()
    %27 = vector.shape_cast %26 : vector<8x8x32xf32> to vector<1x8x8x32xf32>
    %28 = tpu.transpose %27, [0, 2, 1, 3] : vector<1x8x8x32xf32> -> vector<1x8x8x32xf32>
    %29 = vector.shape_cast %28 : vector<1x8x8x32xf32> to vector<8x256xf32>
    %c0_13 = arith.constant 0 : index
    %c0_14 = arith.constant 0 : index
    %30 = vector.load %arg5[%c0_13, %c0_14] : memref<256x32xf32, #tpu.memory_space<vmem>>, vector<256x32xf32>
    %cst_15 = arith.constant dense<0.000000e+00> : vector<8x32xf32>
    %31 = tpu.matmul %29, %30, %cst_15 {dimension_numbers = #tpu.dot_dimension_numbers<[1], [0], [0], [1], [0, 0, 1, 1], [], []>} : vector<8x256xf32>, vector<256x32xf32>, vector<8x32xf32> -> vector<8x32xf32>
    %c0_16 = arith.constant 0 : index
    %c0_17 = arith.constant 0 : index
    %32 = vector.load %arg6[%c0_16, %c0_17] : memref<1x32xf32, #tpu.memory_space<vmem>>, vector<1x32xf32>
    %33 = vector.broadcast %32 : vector<1x32xf32> to vector<8x32xf32>
    %34 = arith.addf %31, %33 : vector<8x32xf32>
    %c0_18 = arith.constant 0 : index
    %c0_19 = arith.constant 0 : index
    %35 = vector.load %arg7[%c0_18, %c0_19] : memref<8x32xf32, #tpu.memory_space<vmem>>, vector<8x32xf32>
    tpu.vector_store %arg7[%c0_18, %c0_19], %34 {strides = array<i32>} : memref<8x32xf32, #tpu.memory_space<vmem>>, vector<8x32xf32>,
    return
  }
  func.func @transform_0(%arg0: i32) -> (i32, i32) {
    %c0_i32 = arith.constant 0 : i32
    %c0_i32_0 = arith.constant 0 : i32
    return %arg0, %c0_i32 : i32, i32
  }
  func.func @transform_1(%arg0: i32) -> (i32, i32) {
    %c0_i32 = arith.constant 0 : i32
    %c0_i32_0 = arith.constant 0 : i32
    %c0_i32_1 = arith.constant 0 : i32
    return %c0_i32, %c0_i32_0 : i32, i32
  }
  func.func @transform_2(%arg0: i32) -> (i32, i32) {
    %c0_i32 = arith.constant 0 : i32
    %c0_i32_0 = arith.constant 0 : i32
    %c0_i32_1 = arith.constant 0 : i32
    return %c0_i32, %c0_i32_0 : i32, i32
  }
  func.func @transform_3(%arg0: i32) -> (i32, i32) {
    %c0_i32 = arith.constant 0 : i32
    %c0_i32_0 = arith.constant 0 : i32
    %c0_i32_1 = arith.constant 0 : i32
    return %c0_i32, %c0_i32_0 : i32, i32
  }
  func.func @transform_4(%arg0: i32) -> (i32, i32) {
    %c0_i32 = arith.constant 0 : i32
    %c0_i32_0 = arith.constant 0 : i32
    %c0_i32_1 = arith.constant 0 : i32
    return %c0_i32, %c0_i32_0 : i32, i32
  }
  func.func @transform_5(%arg0: i32) -> (i32, i32) {
    %c0_i32 = arith.constant 0 : i32
    %c0_i32_0 = arith.constant 0 : i32
    %c0_i32_1 = arith.constant 0 : i32
    return %c0_i32, %c0_i32_0 : i32, i32
  }
  func.func @transform_6(%arg0: i32) -> (i32, i32) {
    %c0_i32 = arith.constant 0 : i32
    %c0_i32_0 = arith.constant 0 : i32
    return %arg0, %c0_i32 : i32, i32
  }
}

</mosaic_0001>

<llo_original>
// kernel: tpu_custom_call.1
$region0: #{tpu_custom_call.1}
  #allocation0 [shape = 'u32[]', space=smem, size = 0x4, offset = 0x4, fixed_abs, tag = 'smem constant byte address 0x4 - core index']
  #allocation1 [shape = 'u32[144,128]{1,0:T(1,128)}', space=vmem, size = 0x12000, scoped, tag = 'internal scratch']
  %s0 = inlined_call_operand.vmem [shape: f32[16,32], index: 0, kind: input, shape index: {}]
  %s1 = inlined_call_operand.vmem [shape: f32[32,256], index: 1, kind: input, shape index: {}]
  %s2 = inlined_call_operand.vmem [shape: f32[32,256], index: 2, kind: input, shape index: {}]
  %s3 = inlined_call_operand.vmem [shape: f32[32,256], index: 3, kind: input, shape index: {}]
  %s4 = inlined_call_operand.vmem [shape: f32[256,32], index: 4, kind: input, shape index: {}]
  %s5 = inlined_call_operand.vmem [shape: f32[1,32], index: 5, kind: input, shape index: {}]
  %s6 = inlined_call_operand.hbm [shape: f32[16,32], index: 6, kind: output, shape index: {}]
  %s7 = sld [smem:[#allocation0]]
  $region57: #{tpu_custom_call.1} parent=0
    _
  %s9 = ssub.s32 1, %s7
  %s10 = scalar_select 0, %s9, %s7
  $region1: #{tpu_custom_call.1} parent=0
    #allocation2 [shape = 'u8[8192]{0}', space=vmem, size = 0x2000, scoped, tag = 'output window, operand 0']
    #allocation3 [shape = 's32[2]{0}', space=sflag, size = 0x8, scoped, tag = 'scoped memory for tpu_custom_call.1']
    %11 = vsyncpa [#allocation3], 0
    %s12 = scalar_lea.sflag [#allocation3], 1
    %13 = vsyncpa %s12, 0
    loop: start=0, step=1, limit=4
    $region2: #{tpu_custom_call.1} parent=1 // loop_pre_header
      _
    $region3: #{tpu_custom_call.1} parent=1 // loop_header
      %s15 = sphi 0, %s19
      %p16 = scmp.ge.s32.totalorder %s15, 4
      %s25 = sphi 0, %s27
      %s28 = sphi 0, %s25
      %s29 = sphi 0, %s28
      %s45 = sphi 0, %s29
      %s49 = sphi 0, %s49
      %s51 = sphi 0, %s49
      %s52 = sphi 0, %s51
      %s66 = sphi 0, %s52
      %s70 = sphi 0, %s70
      %s72 = sphi 0, %s70
      %s73 = sphi 0, %s72
      %s87 = sphi 0, %s73
      %s91 = sphi 0, %s91
      %s93 = sphi 0, %s91
      %s94 = sphi 0, %s93
      %s108 = sphi 0, %s94
      %s112 = sphi 0, %s112
      %s114 = sphi 0, %s112
      %s115 = sphi 0, %s114
      %s129 = sphi 0, %s115
      %s133 = sphi 0, %s133
      %s135 = sphi 0, %s133
      %s136 = sphi 0, %s135
      %s150 = sphi 0, %s136
      %s156 = sphi 0, %s158
      %s159 = sphi 0, %s156
      %s160 = sphi 0, %s159
      %s176 = sphi 0, %s160
    $region4: #{tpu_custom_call.1} parent=1 // loop_header_branch
      %18 = sbr.rel (%p16) target = $region8
    $region5: #{tpu_custom_call.1} parent=1 // loop_body
      %s20 = ssub.s32 %s15, 1
      %s21 = ssub.s32 %s15, 2
      %s22 = sadd.s32 %s15, 1
      %s23 = ssub.s32 %s15, %s22
      %p24 = scmp.eq.s32.totalorder %s23, 0
      %s26 = sadd.s32 %s25, 1
      %s27 = scalar_select %p24, %s25, %s26
      %p30 = pneg %p24
      %p31 = scmp.eq.s32.totalorder %s15, 1
      %p32 = por %p30, %p31
      %p33 = scmp.ne.s32.totalorder %s25, %s28
      %p34 = scmp.eq.s32.totalorder %s15, 0
      %p35 = por %p33, %p34
      %p36 = scmp.ne.s32.totalorder %s25, %s28
      %p37 = scmp.eq.s32.totalorder %s20, 1
      %p38 = por %p36, %p37
      %p39 = scmp.ne.s32.totalorder %s28, %s29
      %p40 = scmp.eq.s32.totalorder %s20, 0
      %p41 = por %p39, %p40
      %p42 = scmp.ne.s32.totalorder %s28, %s29
      %p43 = scmp.eq.s32.totalorder %s21, 1
      %p44 = por %p42, %p43
      %p46 = scmp.ne.s32.totalorder %s29, %s45
      %p47 = scmp.eq.s32.totalorder %s21, 0
      %p48 = por %p46, %p47
      %s50 = sadd.s32 %s49, 1
      %p53 = scmp.eq.s32.totalorder %s15, 1
      %p54 = scmp.ne.s32.totalorder %s49, %s51
      %p55 = scmp.eq.s32.totalorder %s15, 0
      %p56 = por %p54, %p55
      %p57 = scmp.ne.s32.totalorder %s49, %s51
      %p58 = scmp.eq.s32.totalorder %s20, 1
      %p59 = por %p57, %p58
      %p60 = scmp.ne.s32.totalorder %s51, %s52
      %p61 = scmp.eq.s32.totalorder %s20, 0
      %p62 = por %p60, %p61
      %p63 = scmp.ne.s32.totalorder %s51, %s52
      %p64 = scmp.eq.s32.totalorder %s21, 1
      %p65 = por %p63, %p64
      %p67 = scmp.ne.s32.totalorder %s52, %s66
      %p68 = scmp.eq.s32.totalorder %s21, 0
      %p69 = por %p67, %p68
      %s71 = sadd.s32 %s70, 1
      %p74 = scmp.eq.s32.totalorder %s15, 1
      %p75 = scmp.ne.s32.totalorder %s70, %s72
      %p76 = scmp.eq.s32.totalorder %s15, 0
      %p77 = por %p75, %p76
      %p78 = scmp.ne.s32.totalorder %s70, %s72
      %p79 = scmp.eq.s32.totalorder %s20, 1
      %p80 = por %p78, %p79
      %p81 = scmp.ne.s32.totalorder %s72, %s73
      %p82 = scmp.eq.s32.totalorder %s20, 0
      %p83 = por %p81, %p82
      %p84 = scmp.ne.s32.totalorder %s72, %s73
      %p85 = scmp.eq.s32.totalorder %s21, 1
      %p86 = por %p84, %p85
      %p88 = scmp.ne.s32.totalorder %s73, %s87
      %p89 = scmp.eq.s32.totalorder %s21, 0
      %p90 = por %p88, %p89
      %s92 = sadd.s32 %s91, 1
      %p95 = scmp.eq.s32.totalorder %s15, 1
      %p96 = scmp.ne.s32.totalorder %s91, %s93
      %p97 = scmp.eq.s32.totalorder %s15, 0
      %p98 = por %p96, %p97
      %p99 = scmp.ne.s32.totalorder %s91, %s93
      %p100 = scmp.eq.s32.totalorder %s20, 1
      %p101 = por %p99, %p100
      %p102 = scmp.ne.s32.totalorder %s93, %s94
      %p103 = scmp.eq.s32.totalorder %s20, 0
      %p104 = por %p102, %p103
      %p105 = scmp.ne.s32.totalorder %s93, %s94
      %p106 = scmp.eq.s32.totalorder %s21, 1
      %p107 = por %p105, %p106
      %p109 = scmp.ne.s32.totalorder %s94, %s108
      %p110 = scmp.eq.s32.totalorder %s21, 0
      %p111 = por %p109, %p110
      %s113 = sadd.s32 %s112, 1
      %p116 = scmp.eq.s32.totalorder %s15, 1
      %p117 = scmp.ne.s32.totalorder %s112, %s114
      %p118 = scmp.eq.s32.totalorder %s15, 0
      %p119 = por %p117, %p118
      %p120 = scmp.ne.s32.totalorder %s112, %s114
      %p121 = scmp.eq.s32.totalorder %s20, 1
      %p122 = por %p120, %p121
      %p123 = scmp.ne.s32.totalorder %s114, %s115
      %p124 = scmp.eq.s32.totalorder %s20, 0
      %p125 = por %p123, %p124
      %p126 = scmp.ne.s32.totalorder %s114, %s115
      %p127 = scmp.eq.s32.totalorder %s21, 1
      %p128 = por %p126, %p127
      %p130 = scmp.ne.s32.totalorder %s115, %s129
      %p131 = scmp.eq.s32.totalorder %s21, 0
      %p132 = por %p130, %p131
      %s134 = sadd.s32 %s133, 1
      %p137 = scmp.eq.s32.totalorder %s15, 1
      %p138 = scmp.ne.s32.totalorder %s133, %s135
      %p139 = scmp.eq.s32.totalorder %s15, 0
      %p140 = por %p138, %p139
      %p141 = scmp.ne.s32.totalorder %s133, %s135
      %p142 = scmp.eq.s32.totalorder %s20, 1
      %p143 = por %p141, %p142
      %p144 = scmp.ne.s32.totalorder %s135, %s136
      %p145 = scmp.eq.s32.totalorder %s20, 0
      %p146 = por %p144, %p145
      %p147 = scmp.ne.s32.totalorder %s135, %s136
      %p148 = scmp.eq.s32.totalorder %s21, 1
      %p149 = por %p147, %p148
      %p151 = scmp.ne.s32.totalorder %s136, %s150
      %p152 = scmp.eq.s32.totalorder %s21, 0
      %p153 = por %p151, %p152
      %s154 = ssub.s32 %s15, %s22
      %p155 = scmp.eq.s32.totalorder %s154, 0
      %s157 = sadd.s32 %s156, 1
      %s158 = scalar_select %p155, %s156, %s157
      %p161 = pneg %p155
      %p162 = scmp.eq.s32.totalorder %s15, 1
      %p163 = por %p161, %p162
      %p164 = scmp.ne.s32.totalorder %s156, %s159
      %p165 = scmp.eq.s32.totalorder %s15, 0
      %p166 = por %p164, %p165
      %p167 = scmp.ne.s32.totalorder %s156, %s159
      %p168 = scmp.eq.s32.totalorder %s20, 1
      %p169 = por %p167, %p168
      %p170 = scmp.ne.s32.totalorder %s159, %s160
      %p171 = scmp.eq.s32.totalorder %s20, 0
      %p172 = por %p170, %p171
      %p173 = scmp.ne.s32.totalorder %s159, %s160
      %p174 = scmp.eq.s32.totalorder %s21, 1
      %p175 = por %p173, %p174
      %p177 = scmp.ne.s32.totalorder %s160, %s176
      %p178 = scmp.eq.s32.totalorder %s21, 0
      %p179 = por %p177, %p178
      %p180 = scmp.le.s32.totalorder 1, %s15
      %p181 = scmp.lt.s32.totalorder %s15, 3
      %p182 = pnand %p180, %p181
      %p183 = pneg %p182
      // Predicated region
      $region9: #{tpu_custom_call.1} parent=5 // pred_check
        _
      $region10: #{tpu_custom_call.1} parent=5 // pred_check_branch
        %185 = sbr.rel (%p182) target = $region12
      $region11: #{tpu_custom_call.1} parent=5 // pred_region
        %s186 = ssub.s32 %s15, 1
        // Predicated region
        $region13: #{tpu_custom_call.1} parent=11 // pred_check
          %p187 = pneg %p62
        $region14: #{tpu_custom_call.1} parent=11 // pred_check_branch
          %189 = sbr.rel (%p187) target = $region16
        $region15: #{tpu_custom_call.1} parent=11 // pred_region
          _
        $region16: #{tpu_custom_call.1} parent=11 // pred_fallthru
          _
        // Predicated region
        $region17: #{tpu_custom_call.1} parent=11 // pred_check
          %p190 = pneg %p83
        $region18: #{tpu_custom_call.1} parent=11 // pred_check_branch
          %192 = sbr.rel (%p190) target = $region20
        $region19: #{tpu_custom_call.1} parent=11 // pred_region
          _
        $region20: #{tpu_custom_call.1} parent=11 // pred_fallthru
          _
        // Predicated region
        $region21: #{tpu_custom_call.1} parent=11 // pred_check
          %p193 = pneg %p104
        $region22: #{tpu_custom_call.1} parent=11 // pred_check_branch
          %195 = sbr.rel (%p193) target = $region24
        $region23: #{tpu_custom_call.1} parent=11 // pred_region
          _
        $region24: #{tpu_custom_call.1} parent=11 // pred_fallthru
          _
        // Predicated region
        $region25: #{tpu_custom_call.1} parent=11 // pred_check
          %p196 = pneg %p125
        $region26: #{tpu_custom_call.1} parent=11 // pred_check_branch
          %198 = sbr.rel (%p196) target = $region28
        $region27: #{tpu_custom_call.1} parent=11 // pred_region
          _
        $region28: #{tpu_custom_call.1} parent=11 // pred_fallthru
          _
        // Predicated region
        $region29: #{tpu_custom_call.1} parent=11 // pred_check
          %p199 = pneg %p146
        $region30: #{tpu_custom_call.1} parent=11 // pred_check_branch
          %201 = sbr.rel (%p199) target = $region32
        $region31: #{tpu_custom_call.1} parent=11 // pred_region
          _
        $region32: #{tpu_custom_call.1} parent=11 // pred_fallthru
          _
      $region12: #{tpu_custom_call.1} parent=5 // pred_fallthru
        _
      %p202 = scmp.lt.s32.totalorder %s15, 2
      // Predicated region
      $region33: #{tpu_custom_call.1} parent=5 // pred_check
        %p203 = pneg %p202
      $region34: #{tpu_custom_call.1} parent=5 // pred_check_branch
        %205 = sbr.rel (%p203) target = $region36
      $region35: #{tpu_custom_call.1} parent=5 // pred_region
        // Predicated region
        $region37: #{tpu_custom_call.1} parent=35 // pred_check
          %p206 = pneg %p35
        $region38: #{tpu_custom_call.1} parent=35 // pred_check_branch
          %208 = sbr.rel (%p206) target = $region40
        $region39: #{tpu_custom_call.1} parent=35 // pred_region
          %p209 = scmp.lt.s32.totalorder %s15, 1
          %s210 = scalar_select %p209, %s15, 1
          %s211 = smul.addr %s210, 8
          %s212 = scalar_lea.vmem %s0, %s211
        $region40: #{tpu_custom_call.1} parent=35 // pred_fallthru
          _
      $region36: #{tpu_custom_call.1} parent=5 // pred_fallthru
        _
      %p213 = scmp.le.s32.totalorder 1, %s15
      %p214 = scmp.lt.s32.totalorder %s15, 3
      %p215 = pnand %p213, %p214
      %p216 = pneg %p215
      // Predicated region
      $region41: #{tpu_custom_call.1} parent=5 // pred_check
        _
      $region42: #{tpu_custom_call.1} parent=5 // pred_check_branch
        %218 = sbr.rel (%p215) target = $region44
      $region43: #{tpu_custom_call.1} parent=5 // pred_region
        %s219 = ssub.s32 %s15, 1
        %p220 = scmp.lt.s32.totalorder %s20, 1
        %s221 = scalar_select %p220, %s20, 1
        %s222 = smul.addr %s221, 8
        %s223 = scalar_lea.vmem %s0, %s222
        %p224 = pneg %p41
        %p225 = pneg %p38
        %p226 = pneg %p62
        %p227 = pneg %p59
        %p228 = pneg %p83
        %p229 = pneg %p80
        %p230 = pneg %p104
        %p231 = pneg %p101
        %p232 = pneg %p125
        %p233 = pneg %p122
        %p234 = pneg %p146
        %p235 = pneg %p143
        %p236 = pneg %p172
        %p237 = pneg %p169
        %s238 = sand.u32 %s159, 1
        %s239 = scalar_lea.sflag [#allocation3], %s238
        %s240 = sand.u32 %s159, 1
        %s241 = smul.addr %s240, 8
        %s242 = scalar_lea.vmem [#allocation2], %s241
        %p243 = scmp.lt.s32.totalorder %s20, 1
        %s244 = scalar_select %p243, %s20, 1
        %s245 = smul.addr %s244, 8
        %s246 = scalar_lea.vmem %s0, %s245
        %v247 = vld [vmem:[%s246] sm:$0xff]
        %v248 = vld [vmem:[%s1] sm:$0xff]
        %v249 = vld [vmem:[%s1 + $0x8] sm:$0xff]
        %v250 = vld [vmem:[%s1 + $0x10] sm:$0xff]
        %v251 = vld [vmem:[%s1 + $0x18] sm:$0xff]
        %v252 = vld [vmem:[%s1 + $0x20] sm:$0xff]
        %v253 = vld [vmem:[%s1 + $0x28] sm:$0xff]
        %v254 = vld [vmem:[%s1 + $0x30] sm:$0xff]
        %v255 = vld [vmem:[%s1 + $0x38] sm:$0xff]
        %vm256 = vcmask 261120
        %v258 = vsel %vm256, %v247, 0
        %260 = vmatprep.subr.mxu0 0.0
        %261 = vmatpush1.msra.mxu0 0.0
        %262 = vmatprep.subr.mxu0 0.0
        %263 = vmatpush1.msra.mxu0 0.0
        %264 = vmatprep.subr.mxu0 0.0
        %265 = vmatpush1.msra.mxu0 0.0
        %266 = vmatprep.subr.mxu0 0.0
        %267 = vmatpush1.msra.mxu0 0.0
        %268 = vmatprep.subr.mxu0 0.0
        %269 = vmatpush1.msra.mxu0 0.0
        %270 = vmatprep.subr.mxu0 0.0
        %271 = vmatpush1.msra.mxu0 0.0
        %272 = vmatprep.subr.mxu0 0.0
        %273 = vmatpush1.msra.mxu0 0.0
        %274 = vmatprep.subr.mxu0 0.0
        %275 = vmatpush1.msra.mxu0 0.0
        %276 = vmatprep.subr.mxu0 0.0
        %277 = vmatpush1.msra.mxu0 0.0
        %278 = vmatprep.subr.mxu0 0.0
        %279 = vmatpush1.msra.mxu0 0.0
        %280 = vmatprep.subr.mxu0 0.0
        %281 = vmatpush1.msra.mxu0 0.0
        %282 = vmatprep.subr.mxu0 0.0
        %283 = vmatpush1.msra.mxu0 0.0
        %284 = vmatprep.subr.mxu0 %v255
        %285 = vmatpush1.msra.mxu0 %v254
        %286 = vmatprep.subr.mxu0 %v253
        %287 = vmatpush1.msra.mxu0 %v252
        %288 = vmatprep.subr.mxu0 %v251
        %289 = vmatpush1.msra.mxu0 %v250
        %290 = vmatprep.subr.mxu0 %v249
        %291 = vmatpush1.msra.mxu0 %v248
        %292 = vmatprep.subr.mxu0 0.0
        %293 = vmatpush2.msra.mxu0 0.0
        %294 = vmatprep.subr.mxu0 0.0
        %295 = vmatpush2.msra.mxu0 0.0
        %296 = vmatprep.subr.mxu0 0.0
        %297 = vmatpush2.msra.mxu0 0.0
        %298 = vmatprep.subr.mxu0 0.0
        %299 = vmatpush2.msra.mxu0 0.0
        %300 = vmatprep.subr.mxu0 0.0
        %301 = vmatpush2.msra.mxu0 0.0
        %302 = vmatprep.subr.mxu0 0.0
        %303 = vmatpush2.msra.mxu0 0.0
        %304 = vmatprep.subr.mxu0 0.0
        %305 = vmatpush2.msra.mxu0 0.0
        %306 = vmatprep.subr.mxu0 0.0
        %307 = vmatpush2.msra.mxu0 0.0
        %308 = vmatprep.subr.mxu0 0.0
        %309 = vmatpush2.msra.mxu0 0.0
        %310 = vmatprep.subr.mxu0 0.0
        %311 = vmatpush2.msra.mxu0 0.0
        %312 = vmatprep.subr.mxu0 0.0
        %313 = vmatpush2.msra.mxu0 0.0
        %314 = vmatprep.subr.mxu0 0.0
        %315 = vmatpush2.msra.mxu0 0.0
        %316 = vmatprep.subr.mxu0 0.0
        %317 = vmatpush2.msra.mxu0 0.0
        %318 = vmatprep.subr.mxu0 0.0
        %319 = vmatpush2.msra.mxu0 0.0
        %320 = vmatprep.subr.mxu0 0.0
        %321 = vmatpush2.msra.mxu0 0.0
        %322 = vmatprep.subr.mxu0 0.0
        %323 = vmatpush2.msra.mxu0 0.0
        %324 = vmatprep.mubr.f32.mxu0 0.0
        %325 = vmatmul.mubr.f32.gmra.mxu0 %v258
        %v326 = vpop.f32.mrf.mxu0
        %v327 = vadd.f32 0.0, %v326
        %v328 = vpop.f32.mrf.mxu0
        %v329 = vadd.f32 0.0, %v328
        %330 = vdwg.mxu0
        %v331 = vld [vmem:[%s2] sm:$0xff]
        %v332 = vld [vmem:[%s2 + $0x8] sm:$0xff]
        %v333 = vld [vmem:[%s2 + $0x10] sm:$0xff]
        %v334 = vld [vmem:[%s2 + $0x18] sm:$0xff]
        %v335 = vld [vmem:[%s2 + $0x20] sm:$0xff]
        %v336 = vld [vmem:[%s2 + $0x28] sm:$0xff]
        %v337 = vld [vmem:[%s2 + $0x30] sm:$0xff]
        %v338 = vld [vmem:[%s2 + $0x38] sm:$0xff]
        %339 = vmatprep.subr.mxu0 0.0
        %340 = vmatpush1.msra.mxu0 0.0
        %341 = vmatprep.subr.mxu0 0.0
        %342 = vmatpush1.msra.mxu0 0.0
        %343 = vmatprep.subr.mxu0 0.0
        %344 = vmatpush1.msra.mxu0 0.0
        %345 = vmatprep.subr.mxu0 0.0
        %346 = vmatpush1.msra.mxu0 0.0
        %347 = vmatprep.subr.mxu0 0.0
        %348 = vmatpush1.msra.mxu0 0.0
        %349 = vmatprep.subr.mxu0 0.0
        %350 = vmatpush1.msra.mxu0 0.0
        %351 = vmatprep.subr.mxu0 0.0
        %352 = vmatpush1.msra.mxu0 0.0
        %353 = vmatprep.subr.mxu0 0.0
        %354 = vmatpush1.msra.mxu0 0.0
        %355 = vmatprep.subr.mxu0 0.0
        %356 = vmatpush1.msra.mxu0 0.0
        %357 = vmatprep.subr.mxu0 0.0
        %358 = vmatpush1.msra.mxu0 0.0
        %359 = vmatprep.subr.mxu0 0.0
        %360 = vmatpush1.msra.mxu0 0.0
        %361 = vmatprep.subr.mxu0 0.0
        %362 = vmatpush1.msra.mxu0 0.0
        %363 = vmatprep.subr.mxu0 %v338
        %364 = vmatpush1.msra.mxu0 %v337
        %365 = vmatprep.subr.mxu0 %v336
        %366 = vmatpush1.msra.mxu0 %v335
        %367 = vmatprep.subr.mxu0 %v334
        %368 = vmatpush1.msra.mxu0 %v333
        %369 = vmatprep.subr.mxu0 %v332
        %370 = vmatpush1.msra.mxu0 %v331
        %371 = vmatprep.subr.mxu0 0.0
        %372 = vmatpush2.msra.mxu0 0.0
        %373 = vmatprep.subr.mxu0 0.0
        %374 = vmatpush2.msra.mxu0 0.0
        %375 = vmatprep.subr.mxu0 0.0
        %376 = vmatpush2.msra.mxu0 0.0
        %377 = vmatprep.subr.mxu0 0.0
        %378 = vmatpush2.msra.mxu0 0.0
        %379 = vmatprep.subr.mxu0 0.0
        %380 = vmatpush2.msra.mxu0 0.0
        %381 = vmatprep.subr.mxu0 0.0
        %382 = vmatpush2.msra.mxu0 0.0
        %383 = vmatprep.subr.mxu0 0.0
        %384 = vmatpush2.msra.mxu0 0.0
        %385 = vmatprep.subr.mxu0 0.0
        %386 = vmatpush2.msra.mxu0 0.0
        %387 = vmatprep.subr.mxu0 0.0
        %388 = vmatpush2.msra.mxu0 0.0
        %389 = vmatprep.subr.mxu0 0.0
        %390 = vmatpush2.msra.mxu0 0.0
        %391 = vmatprep.subr.mxu0 0.0
        %392 = vmatpush2.msra.mxu0 0.0
        %393 = vmatprep.subr.mxu0 0.0
        %394 = vmatpush2.msra.mxu0 0.0
        %395 = vmatprep.subr.mxu0 0.0
        %396 = vmatpush2.msra.mxu0 0.0
        %397 = vmatprep.subr.mxu0 0.0
        %398 = vmatpush2.msra.mxu0 0.0
        %399 = vmatprep.subr.mxu0 0.0
        %400 = vmatpush2.msra.mxu0 0.0
        %401 = vmatprep.subr.mxu0 0.0
        %402 = vmatpush2.msra.mxu0 0.0
        %403 = vmatprep.mubr.f32.mxu0 0.0
        %404 = vmatmul.mubr.f32.gmra.mxu0 %v258
        %v405 = vpop.f32.mrf.mxu0
        %v406 = vadd.f32 0.0, %v405
        %v407 = vpop.f32.mrf.mxu0
        %v408 = vadd.f32 0.0, %v407
        %409 = vdwg.mxu0
        %v410 = vld [vmem:[%s3] sm:$0xff]
        %v411 = vld [vmem:[%s3 + $0x8] sm:$0xff]
        %v412 = vld [vmem:[%s3 + $0x10] sm:$0xff]
        %v413 = vld [vmem:[%s3 + $0x18] sm:$0xff]
        %v414 = vld [vmem:[%s3 + $0x20] sm:$0xff]
        %v415 = vld [vmem:[%s3 + $0x28] sm:$0xff]
        %v416 = vld [vmem:[%s3 + $0x30] sm:$0xff]
        %v417 = vld [vmem:[%s3 + $0x38] sm:$0xff]
        %418 = vmatprep.subr.mxu0 0.0
        %419 = vmatpush1.msra.mxu0 0.0
        %420 = vmatprep.subr.mxu0 0.0
        %421 = vmatpush1.msra.mxu0 0.0
        %422 = vmatprep.subr.mxu0 0.0
        %423 = vmatpush1.msra.mxu0 0.0
        %424 = vmatprep.subr.mxu0 0.0
        %425 = vmatpush1.msra.mxu0 0.0
        %426 = vmatprep.subr.mxu0 0.0
        %427 = vmatpush1.msra.mxu0 0.0
        %428 = vmatprep.subr.mxu0 0.0
        %429 = vmatpush1.msra.mxu0 0.0
        %430 = vmatprep.subr.mxu0 0.0
        %431 = vmatpush1.msra.mxu0 0.0
        %432 = vmatprep.subr.mxu0 0.0
        %433 = vmatpush1.msra.mxu0 0.0
        %434 = vmatprep.subr.mxu0 0.0
        %435 = vmatpush1.msra.mxu0 0.0
        %436 = vmatprep.subr.mxu0 0.0
        %437 = vmatpush1.msra.mxu0 0.0
        %438 = vmatprep.subr.mxu0 0.0
        %439 = vmatpush1.msra.mxu0 0.0
        %440 = vmatprep.subr.mxu0 0.0
        %441 = vmatpush1.msra.mxu0 0.0
        %442 = vmatprep.subr.mxu0 %v417
        %443 = vmatpush1.msra.mxu0 %v416
        %444 = vmatprep.subr.mxu0 %v415
        %445 = vmatpush1.msra.mxu0 %v414
        %446 = vmatprep.subr.mxu0 %v413
        %447 = vmatpush1.msra.mxu0 %v412
        %448 = vmatprep.subr.mxu0 %v411
        %449 = vmatpush1.msra.mxu0 %v410
        %450 = vmatprep.subr.mxu0 0.0
        %451 = vmatpush2.msra.mxu0 0.0
        %452 = vmatprep.subr.mxu0 0.0
        %453 = vmatpush2.msra.mxu0 0.0
        %454 = vmatprep.subr.mxu0 0.0
        %455 = vmatpush2.msra.mxu0 0.0
        %456 = vmatprep.subr.mxu0 0.0
        %457 = vmatpush2.msra.mxu0 0.0
        %458 = vmatprep.subr.mxu0 0.0
        %459 = vmatpush2.msra.mxu0 0.0
        %460 = vmatprep.subr.mxu0 0.0
        %461 = vmatpush2.msra.mxu0 0.0
        %462 = vmatprep.subr.mxu0 0.0
        %463 = vmatpush2.msra.mxu0 0.0
        %464 = vmatprep.subr.mxu0 0.0
        %465 = vmatpush2.msra.mxu0 0.0
        %466 = vmatprep.subr.mxu0 0.0
        %467 = vmatpush2.msra.mxu0 0.0
        %468 = vmatprep.subr.mxu0 0.0
        %469 = vmatpush2.msra.mxu0 0.0
        %470 = vmatprep.subr.mxu0 0.0
        %471 = vmatpush2.msra.mxu0 0.0
        %472 = vmatprep.subr.mxu0 0.0
        %473 = vmatpush2.msra.mxu0 0.0
        %474 = vmatprep.subr.mxu0 0.0
        %475 = vmatpush2.msra.mxu0 0.0
        %476 = vmatprep.subr.mxu0 0.0
        %477 = vmatpush2.msra.mxu0 0.0
        %478 = vmatprep.subr.mxu0 0.0
        %479 = vmatpush2.msra.mxu0 0.0
        %480 = vmatprep.subr.mxu0 0.0
        %481 = vmatpush2.msra.mxu0 0.0
        %482 = vmatprep.mubr.f32.mxu0 0.0
        %483 = vmatmul.mubr.f32.gmra.mxu0 %v258
        %v484 = vpop.f32.mrf.mxu0
        %v485 = vadd.f32 0.0, %v484
        %v486 = vpop.f32.mrf.mxu0
        %v487 = vadd.f32 0.0, %v486
        %488 = vdwg.mxu0
        %490 = vrot.lane.b32.xlu0 %v327, 96
        %v491 = vpop.permute.xlu0 %490
        %493 = vrot.lane.b32.xlu0 %v327, 64
        %v494 = vpop.permute.xlu0 %493
        %496 = vrot.lane.b32.xlu0 %v327, 32
        %v497 = vpop.permute.xlu0 %496
        %500 = vrot.lane.b32.xlu0 %v329, 96
        %v501 = vpop.permute.xlu0 %500
        %503 = vrot.lane.b32.xlu0 %v329, 64
        %v504 = vpop.permute.xlu0 %503
        %506 = vrot.lane.b32.xlu0 %v329, 32
        %v507 = vpop.permute.xlu0 %506
        %v509 = vcombine.low %v327, %v494
        %v510 = vcombine.high %v327, %v494
        %v512 = vunpack.c.l.s4 1983009808
        %v513 = vunpack.c.0.s8 %v512
        %v514 = vlaneseq
        %v515 = vshrl.u32 %v514, 7
        %v516 = vsub.s32 %v513, %v515
        %v517 = vrot.slane %v509, %v516
        %v519 = vunpack.c.l.s4 1983009808
        %v520 = vunpack.c.0.s8 %v519
        %v521 = vlaneseq
        %v522 = vshrl.u32 %v521, 7
        %v523 = vsub.s32 %v520, %v522
        %v524 = vrot.slane %v510, %v523
        %v525 = vcombine.low %v491, %v497
        %v526 = vcombine.high %v491, %v497
        %v528 = vunpack.c.l.s4 1983009808
        %v529 = vunpack.c.0.s8 %v528
        %v530 = vlaneseq
        %v531 = vshrl.u32 %v530, 7
        %v532 = vsub.s32 %v529, %v531
        %v533 = vrot.slane %v525, %v532
        %v535 = vunpack.c.l.s4 1983009808
        %v536 = vunpack.c.0.s8 %v535
        %v537 = vlaneseq
        %v538 = vshrl.u32 %v537, 7
        %v539 = vsub.s32 %v536, %v538
        %v540 = vrot.slane %v526, %v539
        %v541 = vcombine.low %v329, %v504
        %v542 = vcombine.high %v329, %v504
        %v544 = vunpack.c.l.s4 1983009808
        %v545 = vunpack.c.0.s8 %v544
        %v546 = vlaneseq
        %v547 = vshrl.u32 %v546, 7
        %v548 = vsub.s32 %v545, %v547
        %v549 = vrot.slane %v541, %v548
        %v551 = vunpack.c.l.s4 1983009808
        %v552 = vunpack.c.0.s8 %v551
        %v553 = vlaneseq
        %v554 = vshrl.u32 %v553, 7
        %v555 = vsub.s32 %v552, %v554
        %v556 = vrot.slane %v542, %v555
        %v557 = vcombine.low %v501, %v507
        %v558 = vcombine.high %v501, %v507
        %v560 = vunpack.c.l.s4 1983009808
        %v561 = vunpack.c.0.s8 %v560
        %v562 = vlaneseq
        %v563 = vshrl.u32 %v562, 7
        %v564 = vsub.s32 %v561, %v563
        %v565 = vrot.slane %v557, %v564
        %v567 = vunpack.c.l.s4 1983009808
        %v568 = vunpack.c.0.s8 %v567
        %v569 = vlaneseq
        %v570 = vshrl.u32 %v569, 7
        %v571 = vsub.s32 %v568, %v570
        %v572 = vrot.slane %v558, %v571
        %v573 = vcombine.low %v517, %v533
        %v574 = vcombine.high %v517, %v533
        %v576 = vunpack.c.l.s4 1934713408
        %v577 = vunpack.c.0.s8 %v576
        %v578 = vlaneseq
        %v579 = vshrl.u32 %v578, 7
        %v580 = vsub.s32 %v577, %v579
        %v581 = vrot.slane %v573, %v580
        %v583 = vunpack.c.l.s4 1934713408
        %v584 = vunpack.c.0.s8 %v583
        %v585 = vlaneseq
        %v586 = vshrl.u32 %v585, 7
        %v587 = vsub.s32 %v584, %v586
        %v588 = vrot.slane %v574, %v587
        %v589 = vcombine.low %v524, %v540
        %v590 = vcombine.high %v524, %v540
        %v592 = vunpack.c.l.s4 1934713408
        %v593 = vunpack.c.0.s8 %v592
        %v594 = vlaneseq
        %v595 = vshrl.u32 %v594, 7
        %v596 = vsub.s32 %v593, %v595
        %v597 = vrot.slane %v589, %v596
        %v599 = vunpack.c.l.s4 1934713408
        %v600 = vunpack.c.0.s8 %v599
        %v601 = vlaneseq
        %v602 = vshrl.u32 %v601, 7
        %v603 = vsub.s32 %v600, %v602
        %v604 = vrot.slane %v590, %v603
        %v605 = vcombine.low %v549, %v565
        %v606 = vcombine.high %v549, %v565
        %v608 = vunpack.c.l.s4 1934713408
        %v609 = vunpack.c.0.s8 %v608
        %v610 = vlaneseq
        %v611 = vshrl.u32 %v610, 7
        %v612 = vsub.s32 %v609, %v611
        %v613 = vrot.slane %v605, %v612
        %v615 = vunpack.c.l.s4 1934713408
        %v616 = vunpack.c.0.s8 %v615
        %v617 = vlaneseq
        %v618 = vshrl.u32 %v617, 7
        %v619 = vsub.s32 %v616, %v618
        %v620 = vrot.slane %v606, %v619
        %v621 = vcombine.low %v556, %v572
        %v622 = vcombine.high %v556, %v572
        %v624 = vunpack.c.l.s4 1934713408
        %v625 = vunpack.c.0.s8 %v624
        %v626 = vlaneseq
        %v627 = vshrl.u32 %v626, 7
        %v628 = vsub.s32 %v625, %v627
        %v629 = vrot.slane %v621, %v628
        %v631 = vunpack.c.l.s4 1934713408
        %v632 = vunpack.c.0.s8 %v631
        %v633 = vlaneseq
        %v634 = vshrl.u32 %v633, 7
        %v635 = vsub.s32 %v632, %v634
        %v636 = vrot.slane %v622, %v635
        %v637 = vcombine.low %v581, %v613
        %v638 = vcombine.high %v581, %v613
        %v639 = vcombine.low %v588, %v620
        %v640 = vcombine.high %v588, %v620
        %v641 = vcombine.low %v597, %v629
        %v642 = vcombine.high %v597, %v629
        %v643 = vcombine.low %v604, %v636
        %v644 = vcombine.high %v604, %v636
        %v645 = vcombine.low %v637, %v639
        %v646 = vcombine.high %v637, %v639
        %v648 = vunpack.c.l.s4 1983009808
        %v649 = vunpack.c.0.s8 %v648
        %v650 = vlaneseq
        %v651 = vshrl.u32 %v650, 7
        %v652 = vsub.s32 %v649, %v651
        %v653 = vrot.slane %v645, %v652
        %v655 = vunpack.c.l.s4 1983009808
        %v656 = vunpack.c.0.s8 %v655
        %v657 = vlaneseq
        %v658 = vshrl.u32 %v657, 7
        %v659 = vsub.s32 %v656, %v658
        %v660 = vrot.slane %v646, %v659
        %v661 = vcombine.low %v638, %v640
        %v662 = vcombine.high %v638, %v640
        %v664 = vunpack.c.l.s4 1983009808
        %v665 = vunpack.c.0.s8 %v664
        %v666 = vlaneseq
        %v667 = vshrl.u32 %v666, 7
        %v668 = vsub.s32 %v665, %v667
        %v669 = vrot.slane %v661, %v668
        %v671 = vunpack.c.l.s4 1983009808
        %v672 = vunpack.c.0.s8 %v671
        %v673 = vlaneseq
        %v674 = vshrl.u32 %v673, 7
        %v675 = vsub.s32 %v672, %v674
        %v676 = vrot.slane %v662, %v675
        %v677 = vcombine.low %v641, %v643
        %v678 = vcombine.high %v641, %v643
        %v680 = vunpack.c.l.s4 1983009808
        %v681 = vunpack.c.0.s8 %v680
        %v682 = vlaneseq
        %v683 = vshrl.u32 %v682, 7
        %v684 = vsub.s32 %v681, %v683
        %v685 = vrot.slane %v677, %v684
        %v687 = vunpack.c.l.s4 1983009808
        %v688 = vunpack.c.0.s8 %v687
        %v689 = vlaneseq
        %v690 = vshrl.u32 %v689, 7
        %v691 = vsub.s32 %v688, %v690
        %v692 = vrot.slane %v678, %v691
        %v693 = vcombine.low %v642, %v644
        %v694 = vcombine.high %v642, %v644
        %v696 = vunpack.c.l.s4 1983009808
        %v697 = vunpack.c.0.s8 %v696
        %v698 = vlaneseq
        %v699 = vshrl.u32 %v698, 7
        %v700 = vsub.s32 %v697, %v699
        %v701 = vrot.slane %v693, %v700
        %v703 = vunpack.c.l.s4 1983009808
        %v704 = vunpack.c.0.s8 %v703
        %v705 = vlaneseq
        %v706 = vshrl.u32 %v705, 7
        %v707 = vsub.s32 %v704, %v706
        %v708 = vrot.slane %v694, %v707
        %v709 = vcombine.low %v653, %v669
        %v710 = vcombine.high %v653, %v669
        %v712 = vunpack.c.l.s4 1934713408
        %v713 = vunpack.c.0.s8 %v712
        %v714 = vlaneseq
        %v715 = vshrl.u32 %v714, 7
        %v716 = vsub.s32 %v713, %v715
        %v717 = vrot.slane %v709, %v716
        %v719 = vunpack.c.l.s4 1934713408
        %v720 = vunpack.c.0.s8 %v719
        %v721 = vlaneseq
        %v722 = vshrl.u32 %v721, 7
        %v723 = vsub.s32 %v720, %v722
        %v724 = vrot.slane %v710, %v723
        %v725 = vcombine.low %v660, %v676
        %v726 = vcombine.high %v660, %v676
        %v728 = vunpack.c.l.s4 1934713408
        %v729 = vunpack.c.0.s8 %v728
        %v730 = vlaneseq
        %v731 = vshrl.u32 %v730, 7
        %v732 = vsub.s32 %v729, %v731
        %v733 = vrot.slane %v725, %v732
        %v735 = vunpack.c.l.s4 1934713408
        %v736 = vunpack.c.0.s8 %v735
        %v737 = vlaneseq
        %v738 = vshrl.u32 %v737, 7
        %v739 = vsub.s32 %v736, %v738
        %v740 = vrot.slane %v726, %v739
        %v741 = vcombine.low %v685, %v701
        %v742 = vcombine.high %v685, %v701
        %v744 = vunpack.c.l.s4 1934713408
        %v745 = vunpack.c.0.s8 %v744
        %v746 = vlaneseq
        %v747 = vshrl.u32 %v746, 7
        %v748 = vsub.s32 %v745, %v747
        %v749 = vrot.slane %v741, %v748
        %v751 = vunpack.c.l.s4 1934713408
        %v752 = vunpack.c.0.s8 %v751
        %v753 = vlaneseq
        %v754 = vshrl.u32 %v753, 7
        %v755 = vsub.s32 %v752, %v754
        %v756 = vrot.slane %v742, %v755
        %v757 = vcombine.low %v692, %v708
        %v758 = vcombine.high %v692, %v708
        %v760 = vunpack.c.l.s4 1934713408
        %v761 = vunpack.c.0.s8 %v760
        %v762 = vlaneseq
        %v763 = vshrl.u32 %v762, 7
        %v764 = vsub.s32 %v761, %v763
        %v765 = vrot.slane %v757, %v764
        %v767 = vunpack.c.l.s4 1934713408
        %v768 = vunpack.c.0.s8 %v767
        %v769 = vlaneseq
        %v770 = vshrl.u32 %v769, 7
        %v771 = vsub.s32 %v768, %v770
        %v772 = vrot.slane %v758, %v771
        %v773 = vcombine.low %v717, %v749
        %v774 = vcombine.high %v717, %v749
        %v775 = vcombine.low %v724, %v756
        %v776 = vcombine.high %v724, %v756
        %v777 = vcombine.low %v733, %v765
        %v778 = vcombine.high %v733, %v765
        %v779 = vcombine.low %v740, %v772
        %v780 = vcombine.high %v740, %v772
        %782 = vrot.lane.b32.xlu0 %v406, 96
        %v783 = vpop.permute.xlu0 %782
        %785 = vrot.lane.b32.xlu0 %v406, 64
        %v786 = vpop.permute.xlu0 %785
        %788 = vrot.lane.b32.xlu0 %v406, 32
        %v789 = vpop.permute.xlu0 %788
        %792 = vrot.lane.b32.xlu0 %v408, 96
        %v793 = vpop.permute.xlu0 %792
        %795 = vrot.lane.b32.xlu0 %v408, 64
        %v796 = vpop.permute.xlu0 %795
        %798 = vrot.lane.b32.xlu0 %v408, 32
        %v799 = vpop.permute.xlu0 %798
        %v801 = vcombine.low %v406, %v786
        %v802 = vcombine.high %v406, %v786
        %v804 = vunpack.c.l.s4 1983009808
        %v805 = vunpack.c.0.s8 %v804
        %v806 = vlaneseq
        %v807 = vshrl.u32 %v806, 7
        %v808 = vsub.s32 %v805, %v807
        %v809 = vrot.slane %v801, %v808
        %v811 = vunpack.c.l.s4 1983009808
        %v812 = vunpack.c.0.s8 %v811
        %v813 = vlaneseq
        %v814 = vshrl.u32 %v813, 7
        %v815 = vsub.s32 %v812, %v814
        %v816 = vrot.slane %v802, %v815
        %v817 = vcombine.low %v783, %v789
        %v818 = vcombine.high %v783, %v789
        %v820 = vunpack.c.l.s4 1983009808
        %v821 = vunpack.c.0.s8 %v820
        %v822 = vlaneseq
        %v823 = vshrl.u32 %v822, 7
        %v824 = vsub.s32 %v821, %v823
        %v825 = vrot.slane %v817, %v824
        %v827 = vunpack.c.l.s4 1983009808
        %v828 = vunpack.c.0.s8 %v827
        %v829 = vlaneseq
        %v830 = vshrl.u32 %v829, 7
        %v831 = vsub.s32 %v828, %v830
        %v832 = vrot.slane %v818, %v831
        %v833 = vcombine.low %v408, %v796
        %v834 = vcombine.high %v408, %v796
        %v836 = vunpack.c.l.s4 1983009808
        %v837 = vunpack.c.0.s8 %v836
        %v838 = vlaneseq
        %v839 = vshrl.u32 %v838, 7
        %v840 = vsub.s32 %v837, %v839
        %v841 = vrot.slane %v833, %v840
        %v843 = vunpack.c.l.s4 1983009808
        %v844 = vunpack.c.0.s8 %v843
        %v845 = vlaneseq
        %v846 = vshrl.u32 %v845, 7
        %v847 = vsub.s32 %v844, %v846
        %v848 = vrot.slane %v834, %v847
        %v849 = vcombine.low %v793, %v799
        %v850 = vcombine.high %v793, %v799
        %v852 = vunpack.c.l.s4 1983009808
        %v853 = vunpack.c.0.s8 %v852
        %v854 = vlaneseq
        %v855 = vshrl.u32 %v854, 7
        %v856 = vsub.s32 %v853, %v855
        %v857 = vrot.slane %v849, %v856
        %v859 = vunpack.c.l.s4 1983009808
        %v860 = vunpack.c.0.s8 %v859
        %v861 = vlaneseq
        %v862 = vshrl.u32 %v861, 7
        %v863 = vsub.s32 %v860, %v862
        %v864 = vrot.slane %v850, %v863
        %v865 = vcombine.low %v809, %v825
        %v866 = vcombine.high %v809, %v825
        %v868 = vunpack.c.l.s4 1934713408
        %v869 = vunpack.c.0.s8 %v868
        %v870 = vlaneseq
        %v871 = vshrl.u32 %v870, 7
        %v872 = vsub.s32 %v869, %v871
        %v873 = vrot.slane %v865, %v872
        %v875 = vunpack.c.l.s4 1934713408
        %v876 = vunpack.c.0.s8 %v875
        %v877 = vlaneseq
        %v878 = vshrl.u32 %v877, 7
        %v879 = vsub.s32 %v876, %v878
        %v880 = vrot.slane %v866, %v879
        %v881 = vcombine.low %v816, %v832
        %v882 = vcombine.high %v816, %v832
        %v884 = vunpack.c.l.s4 1934713408
        %v885 = vunpack.c.0.s8 %v884
        %v886 = vlaneseq
        %v887 = vshrl.u32 %v886, 7
        %v888 = vsub.s32 %v885, %v887
        %v889 = vrot.slane %v881, %v888
        %v891 = vunpack.c.l.s4 1934713408
        %v892 = vunpack.c.0.s8 %v891
        %v893 = vlaneseq
        %v894 = vshrl.u32 %v893, 7
        %v895 = vsub.s32 %v892, %v894
        %v896 = vrot.slane %v882, %v895
        %v897 = vcombine.low %v841, %v857
        %v898 = vcombine.high %v841, %v857
        %v900 = vunpack.c.l.s4 1934713408
        %v901 = vunpack.c.0.s8 %v900
        %v902 = vlaneseq
        %v903 = vshrl.u32 %v902, 7
        %v904 = vsub.s32 %v901, %v903
        %v905 = vrot.slane %v897, %v904
        %v907 = vunpack.c.l.s4 1934713408
        %v908 = vunpack.c.0.s8 %v907
        %v909 = vlaneseq
        %v910 = vshrl.u32 %v909, 7
        %v911 = vsub.s32 %v908, %v910
        %v912 = vrot.slane %v898, %v911
        %v913 = vcombine.low %v848, %v864
        %v914 = vcombine.high %v848, %v864
        %v916 = vunpack.c.l.s4 1934713408
        %v917 = vunpack.c.0.s8 %v916
        %v918 = vlaneseq
        %v919 = vshrl.u32 %v918, 7
        %v920 = vsub.s32 %v917, %v919
        %v921 = vrot.slane %v913, %v920
        %v923 = vunpack.c.l.s4 1934713408
        %v924 = vunpack.c.0.s8 %v923
        %v925 = vlaneseq
        %v926 = vshrl.u32 %v925, 7
        %v927 = vsub.s32 %v924, %v926
        %v928 = vrot.slane %v914, %v927
        %v929 = vcombine.low %v873, %v905
        %v930 = vcombine.high %v873, %v905
        %v931 = vcombine.low %v880, %v912
        %v932 = vcombine.high %v880, %v912
        %v933 = vcombine.low %v889, %v921
        %v934 = vcombine.high %v889, %v921
        %v935 = vcombine.low %v896, %v928
        %v936 = vcombine.high %v896, %v928
        %v937 = vcombine.low %v929, %v931
        %v938 = vcombine.high %v929, %v931
        %v940 = vunpack.c.l.s4 1983009808
        %v941 = vunpack.c.0.s8 %v940
        %v942 = vlaneseq
        %v943 = vshrl.u32 %v942, 7
        %v944 = vsub.s32 %v941, %v943
        %v945 = vrot.slane %v937, %v944
        %v947 = vunpack.c.l.s4 1983009808
        %v948 = vunpack.c.0.s8 %v947
        %v949 = vlaneseq
        %v950 = vshrl.u32 %v949, 7
        %v951 = vsub.s32 %v948, %v950
        %v952 = vrot.slane %v938, %v951
        %v953 = vcombine.low %v930, %v932
        %v954 = vcombine.high %v930, %v932
        %v956 = vunpack.c.l.s4 1983009808
        %v957 = vunpack.c.0.s8 %v956
        %v958 = vlaneseq
        %v959 = vshrl.u32 %v958, 7
        %v960 = vsub.s32 %v957, %v959
        %v961 = vrot.slane %v953, %v960
        %v963 = vunpack.c.l.s4 1983009808
        %v964 = vunpack.c.0.s8 %v963
        %v965 = vlaneseq
        %v966 = vshrl.u32 %v965, 7
        %v967 = vsub.s32 %v964, %v966
        %v968 = vrot.slane %v954, %v967
        %v969 = vcombine.low %v933, %v935
        %v970 = vcombine.high %v933, %v935
        %v972 = vunpack.c.l.s4 1983009808
        %v973 = vunpack.c.0.s8 %v972
        %v974 = vlaneseq
        %v975 = vshrl.u32 %v974, 7
        %v976 = vsub.s32 %v973, %v975
        %v977 = vrot.slane %v969, %v976
        %v979 = vunpack.c.l.s4 1983009808
        %v980 = vunpack.c.0.s8 %v979
        %v981 = vlaneseq
        %v982 = vshrl.u32 %v981, 7
        %v983 = vsub.s32 %v980, %v982
        %v984 = vrot.slane %v970, %v983
        %v985 = vcombine.low %v934, %v936
        %v986 = vcombine.high %v934, %v936
        %v988 = vunpack.c.l.s4 1983009808
        %v989 = vunpack.c.0.s8 %v988
        %v990 = vlaneseq
        %v991 = vshrl.u32 %v990, 7
        %v992 = vsub.s32 %v989, %v991
        %v993 = vrot.slane %v985, %v992
        %v995 = vunpack.c.l.s4 1983009808
        %v996 = vunpack.c.0.s8 %v995
        %v997 = vlaneseq
        %v998 = vshrl.u32 %v997, 7
        %v999 = vsub.s32 %v996, %v998
        %v1000 = vrot.slane %v986, %v999
        %v1001 = vcombine.low %v945, %v961
        %v1002 = vcombine.high %v945, %v961
        %v1004 = vunpack.c.l.s4 1934713408
        %v1005 = vunpack.c.0.s8 %v1004
        %v1006 = vlaneseq
        %v1007 = vshrl.u32 %v1006, 7
        %v1008 = vsub.s32 %v1005, %v1007
        %v1009 = vrot.slane %v1001, %v1008
        %v1011 = vunpack.c.l.s4 1934713408
        %v1012 = vunpack.c.0.s8 %v1011
        %v1013 = vlaneseq
        %v1014 = vshrl.u32 %v1013, 7
        %v1015 = vsub.s32 %v1012, %v1014
        %v1016 = vrot.slane %v1002, %v1015
        %v1017 = vcombine.low %v952, %v968
        %v1018 = vcombine.high %v952, %v968
        %v1020 = vunpack.c.l.s4 1934713408
        %v1021 = vunpack.c.0.s8 %v1020
        %v1022 = vlaneseq
        %v1023 = vshrl.u32 %v1022, 7
        %v1024 = vsub.s32 %v1021, %v1023
        %v1025 = vrot.slane %v1017, %v1024
        %v1027 = vunpack.c.l.s4 1934713408
        %v1028 = vunpack.c.0.s8 %v1027
        %v1029 = vlaneseq
        %v1030 = vshrl.u32 %v1029, 7
        %v1031 = vsub.s32 %v1028, %v1030
        %v1032 = vrot.slane %v1018, %v1031
        %v1033 = vcombine.low %v977, %v993
        %v1034 = vcombine.high %v977, %v993
        %v1036 = vunpack.c.l.s4 1934713408
        %v1037 = vunpack.c.0.s8 %v1036
        %v1038 = vlaneseq
        %v1039 = vshrl.u32 %v1038, 7
        %v1040 = vsub.s32 %v1037, %v1039
        %v1041 = vrot.slane %v1033, %v1040
        %v1043 = vunpack.c.l.s4 1934713408
        %v1044 = vunpack.c.0.s8 %v1043
        %v1045 = vlaneseq
        %v1046 = vshrl.u32 %v1045, 7
        %v1047 = vsub.s32 %v1044, %v1046
        %v1048 = vrot.slane %v1034, %v1047
        %v1049 = vcombine.low %v984, %v1000
        %v1050 = vcombine.high %v984, %v1000
        %v1052 = vunpack.c.l.s4 1934713408
        %v1053 = vunpack.c.0.s8 %v1052
        %v1054 = vlaneseq
        %v1055 = vshrl.u32 %v1054, 7
        %v1056 = vsub.s32 %v1053, %v1055
        %v1057 = vrot.slane %v1049, %v1056
        %v1059 = vunpack.c.l.s4 1934713408
        %v1060 = vunpack.c.0.s8 %v1059
        %v1061 = vlaneseq
        %v1062 = vshrl.u32 %v1061, 7
        %v1063 = vsub.s32 %v1060, %v1062
        %v1064 = vrot.slane %v1050, %v1063
        %v1065 = vcombine.low %v1009, %v1041
        %v1066 = vcombine.high %v1009, %v1041
        %v1067 = vcombine.low %v1016, %v1048
        %v1068 = vcombine.high %v1016, %v1048
        %v1069 = vcombine.low %v1025, %v1057
        %v1070 = vcombine.high %v1025, %v1057
        %v1071 = vcombine.low %v1032, %v1064
        %v1072 = vcombine.high %v1032, %v1064
        %1074 = vrot.lane.b32.xlu0 %v485, 96
        %v1075 = vpop.permute.xlu0 %1074
        %1077 = vrot.lane.b32.xlu0 %v485, 64
        %v1078 = vpop.permute.xlu0 %1077
        %1080 = vrot.lane.b32.xlu0 %v485, 32
        %v1081 = vpop.permute.xlu0 %1080
        %1084 = vrot.lane.b32.xlu0 %v487, 96
        %v1085 = vpop.permute.xlu0 %1084
        %1087 = vrot.lane.b32.xlu0 %v487, 64
        %v1088 = vpop.permute.xlu0 %1087
        %1090 = vrot.lane.b32.xlu0 %v487, 32
        %v1091 = vpop.permute.xlu0 %1090
        %v1093 = vcombine.low %v485, %v1078
        %v1094 = vcombine.high %v485, %v1078
        %v1096 = vunpack.c.l.s4 1983009808
        %v1097 = vunpack.c.0.s8 %v1096
        %v1098 = vlaneseq
        %v1099 = vshrl.u32 %v1098, 7
        %v1100 = vsub.s32 %v1097, %v1099
        %v1101 = vrot.slane %v1093, %v1100
        %v1103 = vunpack.c.l.s4 1983009808
        %v1104 = vunpack.c.0.s8 %v1103
        %v1105 = vlaneseq
        %v1106 = vshrl.u32 %v1105, 7
        %v1107 = vsub.s32 %v1104, %v1106
        %v1108 = vrot.slane %v1094, %v1107
        %v1109 = vcombine.low %v1075, %v1081
        %v1110 = vcombine.high %v1075, %v1081
        %v1112 = vunpack.c.l.s4 1983009808
        %v1113 = vunpack.c.0.s8 %v1112
        %v1114 = vlaneseq
        %v1115 = vshrl.u32 %v1114, 7
        %v1116 = vsub.s32 %v1113, %v1115
        %v1117 = vrot.slane %v1109, %v1116
        %v1119 = vunpack.c.l.s4 1983009808
        %v1120 = vunpack.c.0.s8 %v1119
        %v1121 = vlaneseq
        %v1122 = vshrl.u32 %v1121, 7
        %v1123 = vsub.s32 %v1120, %v1122
        %v1124 = vrot.slane %v1110, %v1123
        %v1125 = vcombine.low %v487, %v1088
        %v1126 = vcombine.high %v487, %v1088
        %v1128 = vunpack.c.l.s4 1983009808
        %v1129 = vunpack.c.0.s8 %v1128
        %v1130 = vlaneseq
        %v1131 = vshrl.u32 %v1130, 7
        %v1132 = vsub.s32 %v1129, %v1131
        %v1133 = vrot.slane %v1125, %v1132
        %v1135 = vunpack.c.l.s4 1983009808
        %v1136 = vunpack.c.0.s8 %v1135
        %v1137 = vlaneseq
        %v1138 = vshrl.u32 %v1137, 7
        %v1139 = vsub.s32 %v1136, %v1138
        %v1140 = vrot.slane %v1126, %v1139
        %v1141 = vcombine.low %v1085, %v1091
        %v1142 = vcombine.high %v1085, %v1091
        %v1144 = vunpack.c.l.s4 1983009808
        %v1145 = vunpack.c.0.s8 %v1144
        %v1146 = vlaneseq
        %v1147 = vshrl.u32 %v1146, 7
        %v1148 = vsub.s32 %v1145, %v1147
        %v1149 = vrot.slane %v1141, %v1148
        %v1151 = vunpack.c.l.s4 1983009808
        %v1152 = vunpack.c.0.s8 %v1151
        %v1153 = vlaneseq
        %v1154 = vshrl.u32 %v1153, 7
        %v1155 = vsub.s32 %v1152, %v1154
        %v1156 = vrot.slane %v1142, %v1155
        %v1157 = vcombine.low %v1101, %v1117
        %v1158 = vcombine.high %v1101, %v1117
        %v1160 = vunpack.c.l.s4 1934713408
        %v1161 = vunpack.c.0.s8 %v1160
        %v1162 = vlaneseq
        %v1163 = vshrl.u32 %v1162, 7
        %v1164 = vsub.s32 %v1161, %v1163
        %v1165 = vrot.slane %v1157, %v1164
        %v1167 = vunpack.c.l.s4 1934713408
        %v1168 = vunpack.c.0.s8 %v1167
        %v1169 = vlaneseq
        %v1170 = vshrl.u32 %v1169, 7
        %v1171 = vsub.s32 %v1168, %v1170
        %v1172 = vrot.slane %v1158, %v1171
        %v1173 = vcombine.low %v1108, %v1124
        %v1174 = vcombine.high %v1108, %v1124
        %v1176 = vunpack.c.l.s4 1934713408
        %v1177 = vunpack.c.0.s8 %v1176
        %v1178 = vlaneseq
        %v1179 = vshrl.u32 %v1178, 7
        %v1180 = vsub.s32 %v1177, %v1179
        %v1181 = vrot.slane %v1173, %v1180
        %v1183 = vunpack.c.l.s4 1934713408
        %v1184 = vunpack.c.0.s8 %v1183
        %v1185 = vlaneseq
        %v1186 = vshrl.u32 %v1185, 7
        %v1187 = vsub.s32 %v1184, %v1186
        %v1188 = vrot.slane %v1174, %v1187
        %v1189 = vcombine.low %v1133, %v1149
        %v1190 = vcombine.high %v1133, %v1149
        %v1192 = vunpack.c.l.s4 1934713408
        %v1193 = vunpack.c.0.s8 %v1192
        %v1194 = vlaneseq
        %v1195 = vshrl.u32 %v1194, 7
        %v1196 = vsub.s32 %v1193, %v1195
        %v1197 = vrot.slane %v1189, %v1196
        %v1199 = vunpack.c.l.s4 1934713408
        %v1200 = vunpack.c.0.s8 %v1199
        %v1201 = vlaneseq
        %v1202 = vshrl.u32 %v1201, 7
        %v1203 = vsub.s32 %v1200, %v1202
        %v1204 = vrot.slane %v1190, %v1203
        %v1205 = vcombine.low %v1140, %v1156
        %v1206 = vcombine.high %v1140, %v1156
        %v1208 = vunpack.c.l.s4 1934713408
        %v1209 = vunpack.c.0.s8 %v1208
        %v1210 = vlaneseq
        %v1211 = vshrl.u32 %v1210, 7
        %v1212 = vsub.s32 %v1209, %v1211
        %v1213 = vrot.slane %v1205, %v1212
        %v1215 = vunpack.c.l.s4 1934713408
        %v1216 = vunpack.c.0.s8 %v1215
        %v1217 = vlaneseq
        %v1218 = vshrl.u32 %v1217, 7
        %v1219 = vsub.s32 %v1216, %v1218
        %v1220 = vrot.slane %v1206, %v1219
        %v1221 = vcombine.low %v1165, %v1197
        %v1222 = vcombine.high %v1165, %v1197
        %v1223 = vcombine.low %v1172, %v1204
        %v1224 = vcombine.high %v1172, %v1204
        %v1225 = vcombine.low %v1181, %v1213
        %v1226 = vcombine.high %v1181, %v1213
        %v1227 = vcombine.low %v1188, %v1220
        %v1228 = vcombine.high %v1188, %v1220
        %v1229 = vcombine.low %v1221, %v1223
        %v1230 = vcombine.high %v1221, %v1223
        %v1232 = vunpack.c.l.s4 1983009808
        %v1233 = vunpack.c.0.s8 %v1232
        %v1234 = vlaneseq
        %v1235 = vshrl.u32 %v1234, 7
        %v1236 = vsub.s32 %v1233, %v1235
        %v1237 = vrot.slane %v1229, %v1236
        %v1239 = vunpack.c.l.s4 1983009808
        %v1240 = vunpack.c.0.s8 %v1239
        %v1241 = vlaneseq
        %v1242 = vshrl.u32 %v1241, 7
        %v1243 = vsub.s32 %v1240, %v1242
        %v1244 = vrot.slane %v1230, %v1243
        %v1245 = vcombine.low %v1222, %v1224
        %v1246 = vcombine.high %v1222, %v1224
        %v1248 = vunpack.c.l.s4 1983009808
        %v1249 = vunpack.c.0.s8 %v1248
        %v1250 = vlaneseq
        %v1251 = vshrl.u32 %v1250, 7
        %v1252 = vsub.s32 %v1249, %v1251
        %v1253 = vrot.slane %v1245, %v1252
        %v1255 = vunpack.c.l.s4 1983009808
        %v1256 = vunpack.c.0.s8 %v1255
        %v1257 = vlaneseq
        %v1258 = vshrl.u32 %v1257, 7
        %v1259 = vsub.s32 %v1256, %v1258
        %v1260 = vrot.slane %v1246, %v1259
        %v1261 = vcombine.low %v1225, %v1227
        %v1262 = vcombine.high %v1225, %v1227
        %v1264 = vunpack.c.l.s4 1983009808
        %v1265 = vunpack.c.0.s8 %v1264
        %v1266 = vlaneseq
        %v1267 = vshrl.u32 %v1266, 7
        %v1268 = vsub.s32 %v1265, %v1267
        %v1269 = vrot.slane %v1261, %v1268
        %v1271 = vunpack.c.l.s4 1983009808
        %v1272 = vunpack.c.0.s8 %v1271
        %v1273 = vlaneseq
        %v1274 = vshrl.u32 %v1273, 7
        %v1275 = vsub.s32 %v1272, %v1274
        %v1276 = vrot.slane %v1262, %v1275
        %v1277 = vcombine.low %v1226, %v1228
        %v1278 = vcombine.high %v1226, %v1228
        %v1280 = vunpack.c.l.s4 1983009808
        %v1281 = vunpack.c.0.s8 %v1280
        %v1282 = vlaneseq
        %v1283 = vshrl.u32 %v1282, 7
        %v1284 = vsub.s32 %v1281, %v1283
        %v1285 = vrot.slane %v1277, %v1284
        %v1287 = vunpack.c.l.s4 1983009808
        %v1288 = vunpack.c.0.s8 %v1287
        %v1289 = vlaneseq
        %v1290 = vshrl.u32 %v1289, 7
        %v1291 = vsub.s32 %v1288, %v1290
        %v1292 = vrot.slane %v1278, %v1291
        %v1293 = vcombine.low %v1237, %v1253
        %v1294 = vcombine.high %v1237, %v1253
        %v1296 = vunpack.c.l.s4 1934713408
        %v1297 = vunpack.c.0.s8 %v1296
        %v1298 = vlaneseq
        %v1299 = vshrl.u32 %v1298, 7
        %v1300 = vsub.s32 %v1297, %v1299
        %v1301 = vrot.slane %v1293, %v1300
        %v1303 = vunpack.c.l.s4 1934713408
        %v1304 = vunpack.c.0.s8 %v1303
        %v1305 = vlaneseq
        %v1306 = vshrl.u32 %v1305, 7
        %v1307 = vsub.s32 %v1304, %v1306
        %v1308 = vrot.slane %v1294, %v1307
        %v1309 = vcombine.low %v1244, %v1260
        %v1310 = vcombine.high %v1244, %v1260
        %v1312 = vunpack.c.l.s4 1934713408
        %v1313 = vunpack.c.0.s8 %v1312
        %v1314 = vlaneseq
        %v1315 = vshrl.u32 %v1314, 7
        %v1316 = vsub.s32 %v1313, %v1315
        %v1317 = vrot.slane %v1309, %v1316
        %v1319 = vunpack.c.l.s4 1934713408
        %v1320 = vunpack.c.0.s8 %v1319
        %v1321 = vlaneseq
        %v1322 = vshrl.u32 %v1321, 7
        %v1323 = vsub.s32 %v1320, %v1322
        %v1324 = vrot.slane %v1310, %v1323
        %v1325 = vcombine.low %v1269, %v1285
        %v1326 = vcombine.high %v1269, %v1285
        %v1328 = vunpack.c.l.s4 1934713408
        %v1329 = vunpack.c.0.s8 %v1328
        %v1330 = vlaneseq
        %v1331 = vshrl.u32 %v1330, 7
        %v1332 = vsub.s32 %v1329, %v1331
        %v1333 = vrot.slane %v1325, %v1332
        %v1335 = vunpack.c.l.s4 1934713408
        %v1336 = vunpack.c.0.s8 %v1335
        %v1337 = vlaneseq
        %v1338 = vshrl.u32 %v1337, 7
        %v1339 = vsub.s32 %v1336, %v1338
        %v1340 = vrot.slane %v1326, %v1339
        %v1341 = vcombine.low %v1276, %v1292
        %v1342 = vcombine.high %v1276, %v1292
        %v1344 = vunpack.c.l.s4 1934713408
        %v1345 = vunpack.c.0.s8 %v1344
        %v1346 = vlaneseq
        %v1347 = vshrl.u32 %v1346, 7
        %v1348 = vsub.s32 %v1345, %v1347
        %v1349 = vrot.slane %v1341, %v1348
        %v1351 = vunpack.c.l.s4 1934713408
        %v1352 = vunpack.c.0.s8 %v1351
        %v1353 = vlaneseq
        %v1354 = vshrl.u32 %v1353, 7
        %v1355 = vsub.s32 %v1352, %v1354
        %v1356 = vrot.slane %v1342, %v1355
        %v1357 = vcombine.low %v1301, %v1333
        %v1358 = vcombine.high %v1301, %v1333
        %v1359 = vcombine.low %v1308, %v1340
        %v1360 = vcombine.high %v1308, %v1340
        %v1361 = vcombine.low %v1317, %v1349
        %v1362 = vcombine.high %v1317, %v1349
        %v1363 = vcombine.low %v1324, %v1356
        %v1364 = vcombine.high %v1324, %v1356
        %v1366 = vsel %vm256, %v773, 0
        %v1369 = vsel %vm256, %v1065, 0
        %1371 = vmatprep.subr.mxu0 0.0
        %1372 = vmatpush1.xpose.msra.mxu0 0.0
        %1373 = vmatprep.subr.mxu0 0.0
        %1374 = vmatpush1.xpose.msra.mxu0 0.0
        %1375 = vmatprep.subr.mxu0 0.0
        %1376 = vmatpush1.xpose.msra.mxu0 0.0
        %1377 = vmatprep.subr.mxu0 0.0
        %1378 = vmatpush1.xpose.msra.mxu0 0.0
        %1379 = vmatprep.subr.mxu0 0.0
        %1380 = vmatpush1.xpose.msra.mxu0 0.0
        %1381 = vmatprep.subr.mxu0 0.0
        %1382 = vmatpush1.xpose.msra.mxu0 0.0
        %1383 = vmatprep.subr.mxu0 0.0
        %1384 = vmatpush1.xpose.msra.mxu0 0.0
        %1385 = vmatprep.subr.mxu0 0.0
        %1386 = vmatpush1.xpose.msra.mxu0 0.0
        %1387 = vmatprep.subr.mxu0 0.0
        %1388 = vmatpush1.xpose.msra.mxu0 0.0
        %1389 = vmatprep.subr.mxu0 0.0
        %1390 = vmatpush1.xpose.msra.mxu0 0.0
        %1391 = vmatprep.subr.mxu0 0.0
        %1392 = vmatpush1.xpose.msra.mxu0 0.0
        %1393 = vmatprep.subr.mxu0 0.0
        %1394 = vmatpush1.xpose.msra.mxu0 0.0
        %1395 = vmatprep.subr.mxu0 0.0
        %1396 = vmatpush1.xpose.msra.mxu0 0.0
        %1397 = vmatprep.subr.mxu0 0.0
        %1398 = vmatpush1.xpose.msra.mxu0 0.0
        %1399 = vmatprep.subr.mxu0 0.0
        %1400 = vmatpush1.xpose.msra.mxu0 0.0
        %1401 = vmatprep.subr.mxu0 0.0
        %1402 = vmatpush1.xpose.msra.mxu0 %v1369
        %1403 = vmatprep.subr.mxu0 0.0
        %1404 = vmatpush2.xpose.msra.mxu0 0.0
        %1405 = vmatprep.subr.mxu0 0.0
        %1406 = vmatpush2.xpose.msra.mxu0 0.0
        %1407 = vmatprep.subr.mxu0 0.0
        %1408 = vmatpush2.xpose.msra.mxu0 0.0
        %1409 = vmatprep.subr.mxu0 0.0
        %1410 = vmatpush2.xpose.msra.mxu0 0.0
        %1411 = vmatprep.subr.mxu0 0.0
        %1412 = vmatpush2.xpose.msra.mxu0 0.0
        %1413 = vmatprep.subr.mxu0 0.0
        %1414 = vmatpush2.xpose.msra.mxu0 0.0
        %1415 = vmatprep.subr.mxu0 0.0
        %1416 = vmatpush2.xpose.msra.mxu0 0.0
        %1417 = vmatprep.subr.mxu0 0.0
        %1418 = vmatpush2.xpose.msra.mxu0 0.0
        %1419 = vmatprep.subr.mxu0 0.0
        %1420 = vmatpush2.xpose.msra.mxu0 0.0
        %1421 = vmatprep.subr.mxu0 0.0
        %1422 = vmatpush2.xpose.msra.mxu0 0.0
        %1423 = vmatprep.subr.mxu0 0.0
        %1424 = vmatpush2.xpose.msra.mxu0 0.0
        %1425 = vmatprep.subr.mxu0 0.0
        %1426 = vmatpush2.xpose.msra.mxu0 0.0
        %1427 = vmatprep.subr.mxu0 0.0
        %1428 = vmatpush2.xpose.msra.mxu0 0.0
        %1429 = vmatprep.subr.mxu0 0.0
        %1430 = vmatpush2.xpose.msra.mxu0 0.0
        %1431 = vmatprep.subr.mxu0 0.0
        %1432 = vmatpush2.xpose.msra.mxu0 0.0
        %1433 = vmatprep.subr.mxu0 0.0
        %1434 = vmatpush2.xpose.msra.mxu0 0.0
        %1435 = vmatprep.mubr.f32.mxu0 0.0
        %1436 = vmatmul.mubr.f32.gmra.mxu0 %v1366
        %v1437 = vpop.f32.mrf.mxu0
        %v1438 = vadd.f32 0.0, %v1437
        %v1439 = vpop.f32.mrf.mxu0
        %1440 = vdwg.mxu0
        %v1442 = vsel %vm256, %v774, 0
        %v1445 = vsel %vm256, %v1066, 0
        %1447 = vmatprep.subr.mxu0 0.0
        %1448 = vmatpush1.xpose.msra.mxu0 0.0
        %1449 = vmatprep.subr.mxu0 0.0
        %1450 = vmatpush1.xpose.msra.mxu0 0.0
        %1451 = vmatprep.subr.mxu0 0.0
        %1452 = vmatpush1.xpose.msra.mxu0 0.0
        %1453 = vmatprep.subr.mxu0 0.0
        %1454 = vmatpush1.xpose.msra.mxu0 0.0
        %1455 = vmatprep.subr.mxu0 0.0
        %1456 = vmatpush1.xpose.msra.mxu0 0.0
        %1457 = vmatprep.subr.mxu0 0.0
        %1458 = vmatpush1.xpose.msra.mxu0 0.0
        %1459 = vmatprep.subr.mxu0 0.0
        %1460 = vmatpush1.xpose.msra.mxu0 0.0
        %1461 = vmatprep.subr.mxu0 0.0
        %1462 = vmatpush1.xpose.msra.mxu0 0.0
        %1463 = vmatprep.subr.mxu0 0.0
        %1464 = vmatpush1.xpose.msra.mxu0 0.0
        %1465 = vmatprep.subr.mxu0 0.0
        %1466 = vmatpush1.xpose.msra.mxu0 0.0
        %1467 = vmatprep.subr.mxu0 0.0
        %1468 = vmatpush1.xpose.msra.mxu0 0.0
        %1469 = vmatprep.subr.mxu0 0.0
        %1470 = vmatpush1.xpose.msra.mxu0 0.0
        %1471 = vmatprep.subr.mxu0 0.0
        %1472 = vmatpush1.xpose.msra.mxu0 0.0
        %1473 = vmatprep.subr.mxu0 0.0
        %1474 = vmatpush1.xpose.msra.mxu0 0.0
        %1475 = vmatprep.subr.mxu0 0.0
        %1476 = vmatpush1.xpose.msra.mxu0 0.0
        %1477 = vmatprep.subr.mxu0 0.0
        %1478 = vmatpush1.xpose.msra.mxu0 %v1445
        %1479 = vmatprep.subr.mxu0 0.0
        %1480 = vmatpush2.xpose.msra.mxu0 0.0
        %1481 = vmatprep.subr.mxu0 0.0
        %1482 = vmatpush2.xpose.msra.mxu0 0.0
        %1483 = vmatprep.subr.mxu0 0.0
        %1484 = vmatpush2.xpose.msra.mxu0 0.0
        %1485 = vmatprep.subr.mxu0 0.0
        %1486 = vmatpush2.xpose.msra.mxu0 0.0
        %1487 = vmatprep.subr.mxu0 0.0
        %1488 = vmatpush2.xpose.msra.mxu0 0.0
        %1489 = vmatprep.subr.mxu0 0.0
        %1490 = vmatpush2.xpose.msra.mxu0 0.0
        %1491 = vmatprep.subr.mxu0 0.0
        %1492 = vmatpush2.xpose.msra.mxu0 0.0
        %1493 = vmatprep.subr.mxu0 0.0
        %1494 = vmatpush2.xpose.msra.mxu0 0.0
        %1495 = vmatprep.subr.mxu0 0.0
        %1496 = vmatpush2.xpose.msra.mxu0 0.0
        %1497 = vmatprep.subr.mxu0 0.0
        %1498 = vmatpush2.xpose.msra.mxu0 0.0
        %1499 = vmatprep.subr.mxu0 0.0
        %1500 = vmatpush2.xpose.msra.mxu0 0.0
        %1501 = vmatprep.subr.mxu0 0.0
        %1502 = vmatpush2.xpose.msra.mxu0 0.0
        %1503 = vmatprep.subr.mxu0 0.0
        %1504 = vmatpush2.xpose.msra.mxu0 0.0
        %1505 = vmatprep.subr.mxu0 0.0
        %1506 = vmatpush2.xpose.msra.mxu0 0.0
        %1507 = vmatprep.subr.mxu0 0.0
        %1508 = vmatpush2.xpose.msra.mxu0 0.0
        %1509 = vmatprep.subr.mxu0 0.0
        %1510 = vmatpush2.xpose.msra.mxu0 0.0
        %1511 = vmatprep.mubr.f32.mxu0 0.0
        %1512 = vmatmul.mubr.f32.gmra.mxu0 %v1442
        %v1513 = vpop.f32.mrf.mxu0
        %v1514 = vadd.f32 0.0, %v1513
        %v1515 = vpop.f32.mrf.mxu0
        %1516 = vdwg.mxu0
        %v1518 = vsel %vm256, %v775, 0
        %v1521 = vsel %vm256, %v1067, 0
        %1523 = vmatprep.subr.mxu0 0.0
        %1524 = vmatpush1.xpose.msra.mxu0 0.0
        %1525 = vmatprep.subr.mxu0 0.0
        %1526 = vmatpush1.xpose.msra.mxu0 0.0
        %1527 = vmatprep.subr.mxu0 0.0
        %1528 = vmatpush1.xpose.msra.mxu0 0.0
        %1529 = vmatprep.subr.mxu0 0.0
        %1530 = vmatpush1.xpose.msra.mxu0 0.0
        %1531 = vmatprep.subr.mxu0 0.0
        %1532 = vmatpush1.xpose.msra.mxu0 0.0
        %1533 = vmatprep.subr.mxu0 0.0
        %1534 = vmatpush1.xpose.msra.mxu0 0.0
        %1535 = vmatprep.subr.mxu0 0.0
        %1536 = vmatpush1.xpose.msra.mxu0 0.0
        %1537 = vmatprep.subr.mxu0 0.0
        %1538 = vmatpush1.xpose.msra.mxu0 0.0
        %1539 = vmatprep.subr.mxu0 0.0
        %1540 = vmatpush1.xpose.msra.mxu0 0.0
        %1541 = vmatprep.subr.mxu0 0.0
        %1542 = vmatpush1.xpose.msra.mxu0 0.0
        %1543 = vmatprep.subr.mxu0 0.0
        %1544 = vmatpush1.xpose.msra.mxu0 0.0
        %1545 = vmatprep.subr.mxu0 0.0
        %1546 = vmatpush1.xpose.msra.mxu0 0.0
        %1547 = vmatprep.subr.mxu0 0.0
        %1548 = vmatpush1.xpose.msra.mxu0 0.0
        %1549 = vmatprep.subr.mxu0 0.0
        %1550 = vmatpush1.xpose.msra.mxu0 0.0
        %1551 = vmatprep.subr.mxu0 0.0
        %1552 = vmatpush1.xpose.msra.mxu0 0.0
        %1553 = vmatprep.subr.mxu0 0.0
        %1554 = vmatpush1.xpose.msra.mxu0 %v1521
        %1555 = vmatprep.subr.mxu0 0.0
        %1556 = vmatpush2.xpose.msra.mxu0 0.0
        %1557 = vmatprep.subr.mxu0 0.0
        %1558 = vmatpush2.xpose.msra.mxu0 0.0
        %1559 = vmatprep.subr.mxu0 0.0
        %1560 = vmatpush2.xpose.msra.mxu0 0.0
        %1561 = vmatprep.subr.mxu0 0.0
        %1562 = vmatpush2.xpose.msra.mxu0 0.0
        %1563 = vmatprep.subr.mxu0 0.0
        %1564 = vmatpush2.xpose.msra.mxu0 0.0
        %1565 = vmatprep.subr.mxu0 0.0
        %1566 = vmatpush2.xpose.msra.mxu0 0.0
        %1567 = vmatprep.subr.mxu0 0.0
        %1568 = vmatpush2.xpose.msra.mxu0 0.0
        %1569 = vmatprep.subr.mxu0 0.0
        %1570 = vmatpush2.xpose.msra.mxu0 0.0
        %1571 = vmatprep.subr.mxu0 0.0
        %1572 = vmatpush2.xpose.msra.mxu0 0.0
        %1573 = vmatprep.subr.mxu0 0.0
        %1574 = vmatpush2.xpose.msra.mxu0 0.0
        %1575 = vmatprep.subr.mxu0 0.0
        %1576 = vmatpush2.xpose.msra.mxu0 0.0
        %1577 = vmatprep.subr.mxu0 0.0
        %1578 = vmatpush2.xpose.msra.mxu0 0.0
        %1579 = vmatprep.subr.mxu0 0.0
        %1580 = vmatpush2.xpose.msra.mxu0 0.0
        %1581 = vmatprep.subr.mxu0 0.0
        %1582 = vmatpush2.xpose.msra.mxu0 0.0
        %1583 = vmatprep.subr.mxu0 0.0
        %1584 = vmatpush2.xpose.msra.mxu0 0.0
        %1585 = vmatprep.subr.mxu0 0.0
        %1586 = vmatpush2.xpose.msra.mxu0 0.0
        %1587 = vmatprep.mubr.f32.mxu0 0.0
        %1588 = vmatmul.mubr.f32.gmra.mxu0 %v1518
        %v1589 = vpop.f32.mrf.mxu0
        %v1590 = vadd.f32 0.0, %v1589
        %v1591 = vpop.f32.mrf.mxu0
        %1592 = vdwg.mxu0
        %v1594 = vsel %vm256, %v776, 0
        %v1597 = vsel %vm256, %v1068, 0
        %1599 = vmatprep.subr.mxu0 0.0
        %1600 = vmatpush1.xpose.msra.mxu0 0.0
        %1601 = vmatprep.subr.mxu0 0.0
        %1602 = vmatpush1.xpose.msra.mxu0 0.0
        %1603 = vmatprep.subr.mxu0 0.0
        %1604 = vmatpush1.xpose.msra.mxu0 0.0
        %1605 = vmatprep.subr.mxu0 0.0
        %1606 = vmatpush1.xpose.msra.mxu0 0.0
        %1607 = vmatprep.subr.mxu0 0.0
        %1608 = vmatpush1.xpose.msra.mxu0 0.0
        %1609 = vmatprep.subr.mxu0 0.0
        %1610 = vmatpush1.xpose.msra.mxu0 0.0
        %1611 = vmatprep.subr.mxu0 0.0
        %1612 = vmatpush1.xpose.msra.mxu0 0.0
        %1613 = vmatprep.subr.mxu0 0.0
        %1614 = vmatpush1.xpose.msra.mxu0 0.0
        %1615 = vmatprep.subr.mxu0 0.0
        %1616 = vmatpush1.xpose.msra.mxu0 0.0
        %1617 = vmatprep.subr.mxu0 0.0
        %1618 = vmatpush1.xpose.msra.mxu0 0.0
        %1619 = vmatprep.subr.mxu0 0.0
        %1620 = vmatpush1.xpose.msra.mxu0 0.0
        %1621 = vmatprep.subr.mxu0 0.0
        %1622 = vmatpush1.xpose.msra.mxu0 0.0
        %1623 = vmatprep.subr.mxu0 0.0
        %1624 = vmatpush1.xpose.msra.mxu0 0.0
        %1625 = vmatprep.subr.mxu0 0.0
        %1626 = vmatpush1.xpose.msra.mxu0 0.0
        %1627 = vmatprep.subr.mxu0 0.0
        %1628 = vmatpush1.xpose.msra.mxu0 0.0
        %1629 = vmatprep.subr.mxu0 0.0
        %1630 = vmatpush1.xpose.msra.mxu0 %v1597
        %1631 = vmatprep.subr.mxu0 0.0
        %1632 = vmatpush2.xpose.msra.mxu0 0.0
        %1633 = vmatprep.subr.mxu0 0.0
        %1634 = vmatpush2.xpose.msra.mxu0 0.0
        %1635 = vmatprep.subr.mxu0 0.0
        %1636 = vmatpush2.xpose.msra.mxu0 0.0
        %1637 = vmatprep.subr.mxu0 0.0
        %1638 = vmatpush2.xpose.msra.mxu0 0.0
        %1639 = vmatprep.subr.mxu0 0.0
        %1640 = vmatpush2.xpose.msra.mxu0 0.0
        %1641 = vmatprep.subr.mxu0 0.0
        %1642 = vmatpush2.xpose.msra.mxu0 0.0
        %1643 = vmatprep.subr.mxu0 0.0
        %1644 = vmatpush2.xpose.msra.mxu0 0.0
        %1645 = vmatprep.subr.mxu0 0.0
        %1646 = vmatpush2.xpose.msra.mxu0 0.0
        %1647 = vmatprep.subr.mxu0 0.0
        %1648 = vmatpush2.xpose.msra.mxu0 0.0
        %1649 = vmatprep.subr.mxu0 0.0
        %1650 = vmatpush2.xpose.msra.mxu0 0.0
        %1651 = vmatprep.subr.mxu0 0.0
        %1652 = vmatpush2.xpose.msra.mxu0 0.0
        %1653 = vmatprep.subr.mxu0 0.0
        %1654 = vmatpush2.xpose.msra.mxu0 0.0
        %1655 = vmatprep.subr.mxu0 0.0
        %1656 = vmatpush2.xpose.msra.mxu0 0.0
        %1657 = vmatprep.subr.mxu0 0.0
        %1658 = vmatpush2.xpose.msra.mxu0 0.0
        %1659 = vmatprep.subr.mxu0 0.0
        %1660 = vmatpush2.xpose.msra.mxu0 0.0
        %1661 = vmatprep.subr.mxu0 0.0
        %1662 = vmatpush2.xpose.msra.mxu0 0.0
        %1663 = vmatprep.mubr.f32.mxu0 0.0
        %1664 = vmatmul.mubr.f32.gmra.mxu0 %v1594
        %v1665 = vpop.f32.mrf.mxu0
        %v1666 = vadd.f32 0.0, %v1665
        %v1667 = vpop.f32.mrf.mxu0
        %1668 = vdwg.mxu0
        %v1670 = vsel %vm256, %v777, 0
        %v1673 = vsel %vm256, %v1069, 0
        %1675 = vmatprep.subr.mxu0 0.0
        %1676 = vmatpush1.xpose.msra.mxu0 0.0
        %1677 = vmatprep.subr.mxu0 0.0
        %1678 = vmatpush1.xpose.msra.mxu0 0.0
        %1679 = vmatprep.subr.mxu0 0.0
        %1680 = vmatpush1.xpose.msra.mxu0 0.0
        %1681 = vmatprep.subr.mxu0 0.0
        %1682 = vmatpush1.xpose.msra.mxu0 0.0
        %1683 = vmatprep.subr.mxu0 0.0
        %1684 = vmatpush1.xpose.msra.mxu0 0.0
        %1685 = vmatprep.subr.mxu0 0.0
        %1686 = vmatpush1.xpose.msra.mxu0 0.0
        %1687 = vmatprep.subr.mxu0 0.0
        %1688 = vmatpush1.xpose.msra.mxu0 0.0
        %1689 = vmatprep.subr.mxu0 0.0
        %1690 = vmatpush1.xpose.msra.mxu0 0.0
        %1691 = vmatprep.subr.mxu0 0.0
        %1692 = vmatpush1.xpose.msra.mxu0 0.0
        %1693 = vmatprep.subr.mxu0 0.0
        %1694 = vmatpush1.xpose.msra.mxu0 0.0
        %1695 = vmatprep.subr.mxu0 0.0
        %1696 = vmatpush1.xpose.msra.mxu0 0.0
        %1697 = vmatprep.subr.mxu0 0.0
        %1698 = vmatpush1.xpose.msra.mxu0 0.0
        %1699 = vmatprep.subr.mxu0 0.0
        %1700 = vmatpush1.xpose.msra.mxu0 0.0
        %1701 = vmatprep.subr.mxu0 0.0
        %1702 = vmatpush1.xpose.msra.mxu0 0.0
        %1703 = vmatprep.subr.mxu0 0.0
        %1704 = vmatpush1.xpose.msra.mxu0 0.0
        %1705 = vmatprep.subr.mxu0 0.0
        %1706 = vmatpush1.xpose.msra.mxu0 %v1673
        %1707 = vmatprep.subr.mxu0 0.0
        %1708 = vmatpush2.xpose.msra.mxu0 0.0
        %1709 = vmatprep.subr.mxu0 0.0
        %1710 = vmatpush2.xpose.msra.mxu0 0.0
        %1711 = vmatprep.subr.mxu0 0.0
        %1712 = vmatpush2.xpose.msra.mxu0 0.0
        %1713 = vmatprep.subr.mxu0 0.0
        %1714 = vmatpush2.xpose.msra.mxu0 0.0
        %1715 = vmatprep.subr.mxu0 0.0
        %1716 = vmatpush2.xpose.msra.mxu0 0.0
        %1717 = vmatprep.subr.mxu0 0.0
        %1718 = vmatpush2.xpose.msra.mxu0 0.0
        %1719 = vmatprep.subr.mxu0 0.0
        %1720 = vmatpush2.xpose.msra.mxu0 0.0
        %1721 = vmatprep.subr.mxu0 0.0
        %1722 = vmatpush2.xpose.msra.mxu0 0.0
        %1723 = vmatprep.subr.mxu0 0.0
        %1724 = vmatpush2.xpose.msra.mxu0 0.0
        %1725 = vmatprep.subr.mxu0 0.0
        %1726 = vmatpush2.xpose.msra.mxu0 0.0
        %1727 = vmatprep.subr.mxu0 0.0
        %1728 = vmatpush2.xpose.msra.mxu0 0.0
        %1729 = vmatprep.subr.mxu0 0.0
        %1730 = vmatpush2.xpose.msra.mxu0 0.0
        %1731 = vmatprep.subr.mxu0 0.0
        %1732 = vmatpush2.xpose.msra.mxu0 0.0
        %1733 = vmatprep.subr.mxu0 0.0
        %1734 = vmatpush2.xpose.msra.mxu0 0.0
        %1735 = vmatprep.subr.mxu0 0.0
        %1736 = vmatpush2.xpose.msra.mxu0 0.0
        %1737 = vmatprep.subr.mxu0 0.0
        %1738 = vmatpush2.xpose.msra.mxu0 0.0
        %1739 = vmatprep.mubr.f32.mxu0 0.0
        %1740 = vmatmul.mubr.f32.gmra.mxu0 %v1670
        %v1741 = vpop.f32.mrf.mxu0
        %v1742 = vadd.f32 0.0, %v1741
        %v1743 = vpop.f32.mrf.mxu0
        %1744 = vdwg.mxu0
        %v1746 = vsel %vm256, %v778, 0
        %v1749 = vsel %vm256, %v1070, 0
        %1751 = vmatprep.subr.mxu0 0.0
        %1752 = vmatpush1.xpose.msra.mxu0 0.0
        %1753 = vmatprep.subr.mxu0 0.0
        %1754 = vmatpush1.xpose.msra.mxu0 0.0
        %1755 = vmatprep.subr.mxu0 0.0
        %1756 = vmatpush1.xpose.msra.mxu0 0.0
        %1757 = vmatprep.subr.mxu0 0.0
        %1758 = vmatpush1.xpose.msra.mxu0 0.0
        %1759 = vmatprep.subr.mxu0 0.0
        %1760 = vmatpush1.xpose.msra.mxu0 0.0
        %1761 = vmatprep.subr.mxu0 0.0
        %1762 = vmatpush1.xpose.msra.mxu0 0.0
        %1763 = vmatprep.subr.mxu0 0.0
        %1764 = vmatpush1.xpose.msra.mxu0 0.0
        %1765 = vmatprep.subr.mxu0 0.0
        %1766 = vmatpush1.xpose.msra.mxu0 0.0
        %1767 = vmatprep.subr.mxu0 0.0
        %1768 = vmatpush1.xpose.msra.mxu0 0.0
        %1769 = vmatprep.subr.mxu0 0.0
        %1770 = vmatpush1.xpose.msra.mxu0 0.0
        %1771 = vmatprep.subr.mxu0 0.0
        %1772 = vmatpush1.xpose.msra.mxu0 0.0
        %1773 = vmatprep.subr.mxu0 0.0
        %1774 = vmatpush1.xpose.msra.mxu0 0.0
        %1775 = vmatprep.subr.mxu0 0.0
        %1776 = vmatpush1.xpose.msra.mxu0 0.0
        %1777 = vmatprep.subr.mxu0 0.0
        %1778 = vmatpush1.xpose.msra.mxu0 0.0
        %1779 = vmatprep.subr.mxu0 0.0
        %1780 = vmatpush1.xpose.msra.mxu0 0.0
        %1781 = vmatprep.subr.mxu0 0.0
        %1782 = vmatpush1.xpose.msra.mxu0 %v1749
        %1783 = vmatprep.subr.mxu0 0.0
        %1784 = vmatpush2.xpose.msra.mxu0 0.0
        %1785 = vmatprep.subr.mxu0 0.0
        %1786 = vmatpush2.xpose.msra.mxu0 0.0
        %1787 = vmatprep.subr.mxu0 0.0
        %1788 = vmatpush2.xpose.msra.mxu0 0.0
        %1789 = vmatprep.subr.mxu0 0.0
        %1790 = vmatpush2.xpose.msra.mxu0 0.0
        %1791 = vmatprep.subr.mxu0 0.0
        %1792 = vmatpush2.xpose.msra.mxu0 0.0
        %1793 = vmatprep.subr.mxu0 0.0
        %1794 = vmatpush2.xpose.msra.mxu0 0.0
        %1795 = vmatprep.subr.mxu0 0.0
        %1796 = vmatpush2.xpose.msra.mxu0 0.0
        %1797 = vmatprep.subr.mxu0 0.0
        %1798 = vmatpush2.xpose.msra.mxu0 0.0
        %1799 = vmatprep.subr.mxu0 0.0
        %1800 = vmatpush2.xpose.msra.mxu0 0.0
        %1801 = vmatprep.subr.mxu0 0.0
        %1802 = vmatpush2.xpose.msra.mxu0 0.0
        %1803 = vmatprep.subr.mxu0 0.0
        %1804 = vmatpush2.xpose.msra.mxu0 0.0
        %1805 = vmatprep.subr.mxu0 0.0
        %1806 = vmatpush2.xpose.msra.mxu0 0.0
        %1807 = vmatprep.subr.mxu0 0.0
        %1808 = vmatpush2.xpose.msra.mxu0 0.0
        %1809 = vmatprep.subr.mxu0 0.0
        %1810 = vmatpush2.xpose.msra.mxu0 0.0
        %1811 = vmatprep.subr.mxu0 0.0
        %1812 = vmatpush2.xpose.msra.mxu0 0.0
        %1813 = vmatprep.subr.mxu0 0.0
        %1814 = vmatpush2.xpose.msra.mxu0 0.0
        %1815 = vmatprep.mubr.f32.mxu0 0.0
        %1816 = vmatmul.mubr.f32.gmra.mxu0 %v1746
        %v1817 = vpop.f32.mrf.mxu0
        %v1818 = vadd.f32 0.0, %v1817
        %v1819 = vpop.f32.mrf.mxu0
        %1820 = vdwg.mxu0
        %v1822 = vsel %vm256, %v779, 0
        %v1825 = vsel %vm256, %v1071, 0
        %1827 = vmatprep.subr.mxu0 0.0
        %1828 = vmatpush1.xpose.msra.mxu0 0.0
        %1829 = vmatprep.subr.mxu0 0.0
        %1830 = vmatpush1.xpose.msra.mxu0 0.0
        %1831 = vmatprep.subr.mxu0 0.0
        %1832 = vmatpush1.xpose.msra.mxu0 0.0
        %1833 = vmatprep.subr.mxu0 0.0
        %1834 = vmatpush1.xpose.msra.mxu0 0.0
        %1835 = vmatprep.subr.mxu0 0.0
        %1836 = vmatpush1.xpose.msra.mxu0 0.0
        %1837 = vmatprep.subr.mxu0 0.0
        %1838 = vmatpush1.xpose.msra.mxu0 0.0
        %1839 = vmatprep.subr.mxu0 0.0
        %1840 = vmatpush1.xpose.msra.mxu0 0.0
        %1841 = vmatprep.subr.mxu0 0.0
        %1842 = vmatpush1.xpose.msra.mxu0 0.0
        %1843 = vmatprep.subr.mxu0 0.0
        %1844 = vmatpush1.xpose.msra.mxu0 0.0
        %1845 = vmatprep.subr.mxu0 0.0
        %1846 = vmatpush1.xpose.msra.mxu0 0.0
        %1847 = vmatprep.subr.mxu0 0.0
        %1848 = vmatpush1.xpose.msra.mxu0 0.0
        %1849 = vmatprep.subr.mxu0 0.0
        %1850 = vmatpush1.xpose.msra.mxu0 0.0
        %1851 = vmatprep.subr.mxu0 0.0
        %1852 = vmatpush1.xpose.msra.mxu0 0.0
        %1853 = vmatprep.subr.mxu0 0.0
        %1854 = vmatpush1.xpose.msra.mxu0 0.0
        %1855 = vmatprep.subr.mxu0 0.0
        %1856 = vmatpush1.xpose.msra.mxu0 0.0
        %1857 = vmatprep.subr.mxu0 0.0
        %1858 = vmatpush1.xpose.msra.mxu0 %v1825
        %1859 = vmatprep.subr.mxu0 0.0
        %1860 = vmatpush2.xpose.msra.mxu0 0.0
        %1861 = vmatprep.subr.mxu0 0.0
        %1862 = vmatpush2.xpose.msra.mxu0 0.0
        %1863 = vmatprep.subr.mxu0 0.0
        %1864 = vmatpush2.xpose.msra.mxu0 0.0
        %1865 = vmatprep.subr.mxu0 0.0
        %1866 = vmatpush2.xpose.msra.mxu0 0.0
        %1867 = vmatprep.subr.mxu0 0.0
        %1868 = vmatpush2.xpose.msra.mxu0 0.0
        %1869 = vmatprep.subr.mxu0 0.0
        %1870 = vmatpush2.xpose.msra.mxu0 0.0
        %1871 = vmatprep.subr.mxu0 0.0
        %1872 = vmatpush2.xpose.msra.mxu0 0.0
        %1873 = vmatprep.subr.mxu0 0.0
        %1874 = vmatpush2.xpose.msra.mxu0 0.0
        %1875 = vmatprep.subr.mxu0 0.0
        %1876 = vmatpush2.xpose.msra.mxu0 0.0
        %1877 = vmatprep.subr.mxu0 0.0
        %1878 = vmatpush2.xpose.msra.mxu0 0.0
        %1879 = vmatprep.subr.mxu0 0.0
        %1880 = vmatpush2.xpose.msra.mxu0 0.0
        %1881 = vmatprep.subr.mxu0 0.0
        %1882 = vmatpush2.xpose.msra.mxu0 0.0
        %1883 = vmatprep.subr.mxu0 0.0
        %1884 = vmatpush2.xpose.msra.mxu0 0.0
        %1885 = vmatprep.subr.mxu0 0.0
        %1886 = vmatpush2.xpose.msra.mxu0 0.0
        %1887 = vmatprep.subr.mxu0 0.0
        %1888 = vmatpush2.xpose.msra.mxu0 0.0
        %1889 = vmatprep.subr.mxu0 0.0
        %1890 = vmatpush2.xpose.msra.mxu0 0.0
        %1891 = vmatprep.mubr.f32.mxu0 0.0
        %1892 = vmatmul.mubr.f32.gmra.mxu0 %v1822
        %v1893 = vpop.f32.mrf.mxu0
        %v1894 = vadd.f32 0.0, %v1893
        %v1895 = vpop.f32.mrf.mxu0
        %1896 = vdwg.mxu0
        %v1898 = vsel %vm256, %v780, 0
        %v1901 = vsel %vm256, %v1072, 0
        %1903 = vmatprep.subr.mxu0 0.0
        %1904 = vmatpush1.xpose.msra.mxu0 0.0
        %1905 = vmatprep.subr.mxu0 0.0
        %1906 = vmatpush1.xpose.msra.mxu0 0.0
        %1907 = vmatprep.subr.mxu0 0.0
        %1908 = vmatpush1.xpose.msra.mxu0 0.0
        %1909 = vmatprep.subr.mxu0 0.0
        %1910 = vmatpush1.xpose.msra.mxu0 0.0
        %1911 = vmatprep.subr.mxu0 0.0
        %1912 = vmatpush1.xpose.msra.mxu0 0.0
        %1913 = vmatprep.subr.mxu0 0.0
        %1914 = vmatpush1.xpose.msra.mxu0 0.0
        %1915 = vmatprep.subr.mxu0 0.0
        %1916 = vmatpush1.xpose.msra.mxu0 0.0
        %1917 = vmatprep.subr.mxu0 0.0
        %1918 = vmatpush1.xpose.msra.mxu0 0.0
        %1919 = vmatprep.subr.mxu0 0.0
        %1920 = vmatpush1.xpose.msra.mxu0 0.0
        %1921 = vmatprep.subr.mxu0 0.0
        %1922 = vmatpush1.xpose.msra.mxu0 0.0
        %1923 = vmatprep.subr.mxu0 0.0
        %1924 = vmatpush1.xpose.msra.mxu0 0.0
        %1925 = vmatprep.subr.mxu0 0.0
        %1926 = vmatpush1.xpose.msra.mxu0 0.0
        %1927 = vmatprep.subr.mxu0 0.0
        %1928 = vmatpush1.xpose.msra.mxu0 0.0
        %1929 = vmatprep.subr.mxu0 0.0
        %1930 = vmatpush1.xpose.msra.mxu0 0.0
        %1931 = vmatprep.subr.mxu0 0.0
        %1932 = vmatpush1.xpose.msra.mxu0 0.0
        %1933 = vmatprep.subr.mxu0 0.0
        %1934 = vmatpush1.xpose.msra.mxu0 %v1901
        %1935 = vmatprep.subr.mxu0 0.0
        %1936 = vmatpush2.xpose.msra.mxu0 0.0
        %1937 = vmatprep.subr.mxu0 0.0
        %1938 = vmatpush2.xpose.msra.mxu0 0.0
        %1939 = vmatprep.subr.mxu0 0.0
        %1940 = vmatpush2.xpose.msra.mxu0 0.0
        %1941 = vmatprep.subr.mxu0 0.0
        %1942 = vmatpush2.xpose.msra.mxu0 0.0
        %1943 = vmatprep.subr.mxu0 0.0
        %1944 = vmatpush2.xpose.msra.mxu0 0.0
        %1945 = vmatprep.subr.mxu0 0.0
        %1946 = vmatpush2.xpose.msra.mxu0 0.0
        %1947 = vmatprep.subr.mxu0 0.0
        %1948 = vmatpush2.xpose.msra.mxu0 0.0
        %1949 = vmatprep.subr.mxu0 0.0
        %1950 = vmatpush2.xpose.msra.mxu0 0.0
        %1951 = vmatprep.subr.mxu0 0.0
        %1952 = vmatpush2.xpose.msra.mxu0 0.0
        %1953 = vmatprep.subr.mxu0 0.0
        %1954 = vmatpush2.xpose.msra.mxu0 0.0
        %1955 = vmatprep.subr.mxu0 0.0
        %1956 = vmatpush2.xpose.msra.mxu0 0.0
        %1957 = vmatprep.subr.mxu0 0.0
        %1958 = vmatpush2.xpose.msra.mxu0 0.0
        %1959 = vmatprep.subr.mxu0 0.0
        %1960 = vmatpush2.xpose.msra.mxu0 0.0
        %1961 = vmatprep.subr.mxu0 0.0
        %1962 = vmatpush2.xpose.msra.mxu0 0.0
        %1963 = vmatprep.subr.mxu0 0.0
        %1964 = vmatpush2.xpose.msra.mxu0 0.0
        %1965 = vmatprep.subr.mxu0 0.0
        %1966 = vmatpush2.xpose.msra.mxu0 0.0
        %1967 = vmatprep.mubr.f32.mxu0 0.0
        %1968 = vmatmul.mubr.f32.gmra.mxu0 %v1898
        %v1969 = vpop.f32.mrf.mxu0
        %v1970 = vadd.f32 0.0, %v1969
        %v1971 = vpop.f32.mrf.mxu0
        %1972 = vdwg.mxu0
        %vm1973 = vcmask 64512
        %v1974 = vsel %vm1973, %v1438, -inf
        %1975 = vmax.xlane.f32.xlu0 %v1974
        %v1976 = vpop.xlane.xlu0 %1975
        %v1977 = vsel %vm1973, %v1514, -inf
        %1978 = vmax.xlane.f32.xlu0 %v1977
        %v1979 = vpop.xlane.xlu0 %1978
        %v1980 = vsel %vm1973, %v1590, -inf
        %1981 = vmax.xlane.f32.xlu0 %v1980
        %v1982 = vpop.xlane.xlu0 %1981
        %v1983 = vsel %vm1973, %v1666, -inf
        %1984 = vmax.xlane.f32.xlu0 %v1983
        %v1985 = vpop.xlane.xlu0 %1984
        %v1986 = vsel %vm1973, %v1742, -inf
        %1987 = vmax.xlane.f32.xlu0 %v1986
        %v1988 = vpop.xlane.xlu0 %1987
        %v1989 = vsel %vm1973, %v1818, -inf
        %1990 = vmax.xlane.f32.xlu0 %v1989
        %v1991 = vpop.xlane.xlu0 %1990
        %v1992 = vsel %vm1973, %v1894, -inf
        %1993 = vmax.xlane.f32.xlu0 %v1992
        %v1994 = vpop.xlane.xlu0 %1993
        %v1995 = vsel %vm1973, %v1970, -inf
        %1996 = vmax.xlane.f32.xlu0 %v1995
        %v1997 = vpop.xlane.xlu0 %1996
        %v1998 = vsub.f32 %v1438, %v1976
        %v1999 = vsub.f32 %v1514, %v1979
        %v2000 = vsub.f32 %v1590, %v1982
        %v2001 = vsub.f32 %v1666, %v1985
        %v2002 = vsub.f32 %v1742, %v1988
        %v2003 = vsub.f32 %v1818, %v1991
        %v2004 = vsub.f32 %v1894, %v1994
        %v2005 = vsub.f32 %v1970, %v1997
        %v2006 = vmul.f32 %v1998, 1.442695
        %v2007 = vpow.pop %v2006
        %v2008 = vmul.f32 %v1999, 1.442695
        %v2009 = vpow.pop %v2008
        %v2010 = vmul.f32 %v2000, 1.442695
        %v2011 = vpow.pop %v2010
        %v2012 = vmul.f32 %v2001, 1.442695
        %v2013 = vpow.pop %v2012
        %v2014 = vmul.f32 %v2002, 1.442695
        %v2015 = vpow.pop %v2014
        %v2016 = vmul.f32 %v2003, 1.442695
        %v2017 = vpow.pop %v2016
        %v2018 = vmul.f32 %v2004, 1.442695
        %v2019 = vpow.pop %v2018
        %v2020 = vmul.f32 %v2005, 1.442695
        %v2021 = vpow.pop %v2020
        %v2022 = vsel %vm1973, %v2007, 0.0
        %2023 = vadd.xlane.f32.xlu0 %v2022
        %v2024 = vpop.xlane.xlu0 %2023
        %v2025 = vsel %vm1973, %v2009, 0.0
        %2026 = vadd.xlane.f32.xlu0 %v2025
        %v2027 = vpop.xlane.xlu0 %2026
        %v2028 = vsel %vm1973, %v2011, 0.0
        %2029 = vadd.xlane.f32.xlu0 %v2028
        %v2030 = vpop.xlane.xlu0 %2029
        %v2031 = vsel %vm1973, %v2013, 0.0
        %2032 = vadd.xlane.f32.xlu0 %v2031
        %v2033 = vpop.xlane.xlu0 %2032
        %v2034 = vsel %vm1973, %v2015, 0.0
        %2035 = vadd.xlane.f32.xlu0 %v2034
        %v2036 = vpop.xlane.xlu0 %2035
        %v2037 = vsel %vm1973, %v2017, 0.0
        %2038 = vadd.xlane.f32.xlu0 %v2037
        %v2039 = vpop.xlane.xlu0 %2038
        %v2040 = vsel %vm1973, %v2019, 0.0
        %2041 = vadd.xlane.f32.xlu0 %v2040
        %v2042 = vpop.xlane.xlu0 %2041
        %v2043 = vsel %vm1973, %v2021, 0.0
        %2044 = vadd.xlane.f32.xlu0 %v2043
        %v2045 = vpop.xlane.xlu0 %2044
        %v2046 = vrcp.pop %v2024
        %v2047 = vmul.f32 %v2007, %v2046
        %v2048 = vrcp.pop %v2027
        %v2049 = vmul.f32 %v2009, %v2048
        %v2050 = vrcp.pop %v2030
        %v2051 = vmul.f32 %v2011, %v2050
        %v2052 = vrcp.pop %v2033
        %v2053 = vmul.f32 %v2013, %v2052
        %v2054 = vrcp.pop %v2036
        %v2055 = vmul.f32 %v2015, %v2054
        %v2056 = vrcp.pop %v2039
        %v2057 = vmul.f32 %v2017, %v2056
        %v2058 = vrcp.pop %v2042
        %v2059 = vmul.f32 %v2019, %v2058
        %v2060 = vrcp.pop %v2045
        %v2061 = vmul.f32 %v2021, %v2060
        %v2063 = vsel %vm1973, %v2047, 0
        %2065 = vmatprep.subr.mxu0 0.0
        %2066 = vmatpush1.msra.mxu0 0.0
        %2067 = vmatprep.subr.mxu0 0.0
        %2068 = vmatpush1.msra.mxu0 0.0
        %2069 = vmatprep.subr.mxu0 0.0
        %2070 = vmatpush1.msra.mxu0 0.0
        %2071 = vmatprep.subr.mxu0 0.0
        %2072 = vmatpush1.msra.mxu0 0.0
        %2073 = vmatprep.subr.mxu0 0.0
        %2074 = vmatpush1.msra.mxu0 0.0
        %2075 = vmatprep.subr.mxu0 0.0
        %2076 = vmatpush1.msra.mxu0 0.0
        %2077 = vmatprep.subr.mxu0 0.0
        %2078 = vmatpush1.msra.mxu0 0.0
        %2079 = vmatprep.subr.mxu0 0.0
        %2080 = vmatpush1.msra.mxu0 0.0
        %2081 = vmatprep.subr.mxu0 0.0
        %2082 = vmatpush1.msra.mxu0 0.0
        %2083 = vmatprep.subr.mxu0 0.0
        %2084 = vmatpush1.msra.mxu0 0.0
        %2085 = vmatprep.subr.mxu0 0.0
        %2086 = vmatpush1.msra.mxu0 0.0
        %2087 = vmatprep.subr.mxu0 0.0
        %2088 = vmatpush1.msra.mxu0 0.0
        %2089 = vmatprep.subr.mxu0 0.0
        %2090 = vmatpush1.msra.mxu0 0.0
        %2091 = vmatprep.subr.mxu0 0.0
        %2092 = vmatpush1.msra.mxu0 0.0
        %2093 = vmatprep.subr.mxu0 0.0
        %2094 = vmatpush1.msra.mxu0 0.0
        %2095 = vmatprep.subr.mxu0 0.0
        %2096 = vmatpush1.msra.mxu0 %v1357
        %2097 = vmatprep.subr.mxu0 0.0
        %2098 = vmatpush2.msra.mxu0 0.0
        %2099 = vmatprep.subr.mxu0 0.0
        %2100 = vmatpush2.msra.mxu0 0.0
        %2101 = vmatprep.subr.mxu0 0.0
        %2102 = vmatpush2.msra.mxu0 0.0
        %2103 = vmatprep.subr.mxu0 0.0
        %2104 = vmatpush2.msra.mxu0 0.0
        %2105 = vmatprep.subr.mxu0 0.0
        %2106 = vmatpush2.msra.mxu0 0.0
        %2107 = vmatprep.subr.mxu0 0.0
        %2108 = vmatpush2.msra.mxu0 0.0
        %2109 = vmatprep.subr.mxu0 0.0
        %2110 = vmatpush2.msra.mxu0 0.0
        %2111 = vmatprep.subr.mxu0 0.0
        %2112 = vmatpush2.msra.mxu0 0.0
        %2113 = vmatprep.subr.mxu0 0.0
        %2114 = vmatpush2.msra.mxu0 0.0
        %2115 = vmatprep.subr.mxu0 0.0
        %2116 = vmatpush2.msra.mxu0 0.0
        %2117 = vmatprep.subr.mxu0 0.0
        %2118 = vmatpush2.msra.mxu0 0.0
        %2119 = vmatprep.subr.mxu0 0.0
        %2120 = vmatpush2.msra.mxu0 0.0
        %2121 = vmatprep.subr.mxu0 0.0
        %2122 = vmatpush2.msra.mxu0 0.0
        %2123 = vmatprep.subr.mxu0 0.0
        %2124 = vmatpush2.msra.mxu0 0.0
        %2125 = vmatprep.subr.mxu0 0.0
        %2126 = vmatpush2.msra.mxu0 0.0
        %2127 = vmatprep.subr.mxu0 0.0
        %2128 = vmatpush2.msra.mxu0 0.0
        %2129 = vmatprep.mubr.f32.mxu0 0.0
        %2130 = vmatmul.mubr.f32.gmra.mxu0 %v2063
        %v2131 = vpop.f32.mrf.mxu0
        %v2132 = vadd.f32 0.0, %v2131
        %v2133 = vpop.f32.mrf.mxu0
        %2134 = vdwg.mxu0
        %v2136 = vsel %vm1973, %v2049, 0
        %2138 = vmatprep.subr.mxu0 0.0
        %2139 = vmatpush1.msra.mxu0 0.0
        %2140 = vmatprep.subr.mxu0 0.0
        %2141 = vmatpush1.msra.mxu0 0.0
        %2142 = vmatprep.subr.mxu0 0.0
        %2143 = vmatpush1.msra.mxu0 0.0
        %2144 = vmatprep.subr.mxu0 0.0
        %2145 = vmatpush1.msra.mxu0 0.0
        %2146 = vmatprep.subr.mxu0 0.0
        %2147 = vmatpush1.msra.mxu0 0.0
        %2148 = vmatprep.subr.mxu0 0.0
        %2149 = vmatpush1.msra.mxu0 0.0
        %2150 = vmatprep.subr.mxu0 0.0
        %2151 = vmatpush1.msra.mxu0 0.0
        %2152 = vmatprep.subr.mxu0 0.0
        %2153 = vmatpush1.msra.mxu0 0.0
        %2154 = vmatprep.subr.mxu0 0.0
        %2155 = vmatpush1.msra.mxu0 0.0
        %2156 = vmatprep.subr.mxu0 0.0
        %2157 = vmatpush1.msra.mxu0 0.0
        %2158 = vmatprep.subr.mxu0 0.0
        %2159 = vmatpush1.msra.mxu0 0.0
        %2160 = vmatprep.subr.mxu0 0.0
        %2161 = vmatpush1.msra.mxu0 0.0
        %2162 = vmatprep.subr.mxu0 0.0
        %2163 = vmatpush1.msra.mxu0 0.0
        %2164 = vmatprep.subr.mxu0 0.0
        %2165 = vmatpush1.msra.mxu0 0.0
        %2166 = vmatprep.subr.mxu0 0.0
        %2167 = vmatpush1.msra.mxu0 0.0
        %2168 = vmatprep.subr.mxu0 0.0
        %2169 = vmatpush1.msra.mxu0 %v1358
        %2170 = vmatprep.subr.mxu0 0.0
        %2171 = vmatpush2.msra.mxu0 0.0
        %2172 = vmatprep.subr.mxu0 0.0
        %2173 = vmatpush2.msra.mxu0 0.0
        %2174 = vmatprep.subr.mxu0 0.0
        %2175 = vmatpush2.msra.mxu0 0.0
        %2176 = vmatprep.subr.mxu0 0.0
        %2177 = vmatpush2.msra.mxu0 0.0
        %2178 = vmatprep.subr.mxu0 0.0
        %2179 = vmatpush2.msra.mxu0 0.0
        %2180 = vmatprep.subr.mxu0 0.0
        %2181 = vmatpush2.msra.mxu0 0.0
        %2182 = vmatprep.subr.mxu0 0.0
        %2183 = vmatpush2.msra.mxu0 0.0
        %2184 = vmatprep.subr.mxu0 0.0
        %2185 = vmatpush2.msra.mxu0 0.0
        %2186 = vmatprep.subr.mxu0 0.0
        %2187 = vmatpush2.msra.mxu0 0.0
        %2188 = vmatprep.subr.mxu0 0.0
        %2189 = vmatpush2.msra.mxu0 0.0
        %2190 = vmatprep.subr.mxu0 0.0
        %2191 = vmatpush2.msra.mxu0 0.0
        %2192 = vmatprep.subr.mxu0 0.0
        %2193 = vmatpush2.msra.mxu0 0.0
        %2194 = vmatprep.subr.mxu0 0.0
        %2195 = vmatpush2.msra.mxu0 0.0
        %2196 = vmatprep.subr.mxu0 0.0
        %2197 = vmatpush2.msra.mxu0 0.0
        %2198 = vmatprep.subr.mxu0 0.0
        %2199 = vmatpush2.msra.mxu0 0.0
        %2200 = vmatprep.subr.mxu0 0.0
        %2201 = vmatpush2.msra.mxu0 0.0
        %2202 = vmatprep.mubr.f32.mxu0 0.0
        %2203 = vmatmul.mubr.f32.gmra.mxu0 %v2136
        %v2204 = vpop.f32.mrf.mxu0
        %v2205 = vadd.f32 0.0, %v2204
        %v2206 = vpop.f32.mrf.mxu0
        %2207 = vdwg.mxu0
        %v2209 = vsel %vm1973, %v2051, 0
        %2211 = vmatprep.subr.mxu0 0.0
        %2212 = vmatpush1.msra.mxu0 0.0
        %2213 = vmatprep.subr.mxu0 0.0
        %2214 = vmatpush1.msra.mxu0 0.0
        %2215 = vmatprep.subr.mxu0 0.0
        %2216 = vmatpush1.msra.mxu0 0.0
        %2217 = vmatprep.subr.mxu0 0.0
        %2218 = vmatpush1.msra.mxu0 0.0
        %2219 = vmatprep.subr.mxu0 0.0
        %2220 = vmatpush1.msra.mxu0 0.0
        %2221 = vmatprep.subr.mxu0 0.0
        %2222 = vmatpush1.msra.mxu0 0.0
        %2223 = vmatprep.subr.mxu0 0.0
        %2224 = vmatpush1.msra.mxu0 0.0
        %2225 = vmatprep.subr.mxu0 0.0
        %2226 = vmatpush1.msra.mxu0 0.0
        %2227 = vmatprep.subr.mxu0 0.0
        %2228 = vmatpush1.msra.mxu0 0.0
        %2229 = vmatprep.subr.mxu0 0.0
        %2230 = vmatpush1.msra.mxu0 0.0
        %2231 = vmatprep.subr.mxu0 0.0
        %2232 = vmatpush1.msra.mxu0 0.0
        %2233 = vmatprep.subr.mxu0 0.0
        %2234 = vmatpush1.msra.mxu0 0.0
        %2235 = vmatprep.subr.mxu0 0.0
        %2236 = vmatpush1.msra.mxu0 0.0
        %2237 = vmatprep.subr.mxu0 0.0
        %2238 = vmatpush1.msra.mxu0 0.0
        %2239 = vmatprep.subr.mxu0 0.0
        %2240 = vmatpush1.msra.mxu0 0.0
        %2241 = vmatprep.subr.mxu0 0.0
        %2242 = vmatpush1.msra.mxu0 %v1359
        %2243 = vmatprep.subr.mxu0 0.0
        %2244 = vmatpush2.msra.mxu0 0.0
        %2245 = vmatprep.subr.mxu0 0.0
        %2246 = vmatpush2.msra.mxu0 0.0
        %2247 = vmatprep.subr.mxu0 0.0
        %2248 = vmatpush2.msra.mxu0 0.0
        %2249 = vmatprep.subr.mxu0 0.0
        %2250 = vmatpush2.msra.mxu0 0.0
        %2251 = vmatprep.subr.mxu0 0.0
        %2252 = vmatpush2.msra.mxu0 0.0
        %2253 = vmatprep.subr.mxu0 0.0
        %2254 = vmatpush2.msra.mxu0 0.0
        %2255 = vmatprep.subr.mxu0 0.0
        %2256 = vmatpush2.msra.mxu0 0.0
        %2257 = vmatprep.subr.mxu0 0.0
        %2258 = vmatpush2.msra.mxu0 0.0
        %2259 = vmatprep.subr.mxu0 0.0
        %2260 = vmatpush2.msra.mxu0 0.0
        %2261 = vmatprep.subr.mxu0 0.0
        %2262 = vmatpush2.msra.mxu0 0.0
        %2263 = vmatprep.subr.mxu0 0.0
        %2264 = vmatpush2.msra.mxu0 0.0
        %2265 = vmatprep.subr.mxu0 0.0
        %2266 = vmatpush2.msra.mxu0 0.0
        %2267 = vmatprep.subr.mxu0 0.0
        %2268 = vmatpush2.msra.mxu0 0.0
        %2269 = vmatprep.subr.mxu0 0.0
        %2270 = vmatpush2.msra.mxu0 0.0
        %2271 = vmatprep.subr.mxu0 0.0
        %2272 = vmatpush2.msra.mxu0 0.0
        %2273 = vmatprep.subr.mxu0 0.0
        %2274 = vmatpush2.msra.mxu0 0.0
        %2275 = vmatprep.mubr.f32.mxu0 0.0
        %2276 = vmatmul.mubr.f32.gmra.mxu0 %v2209
        %v2277 = vpop.f32.mrf.mxu0
        %v2278 = vadd.f32 0.0, %v2277
        %v2279 = vpop.f32.mrf.mxu0
        %2280 = vdwg.mxu0
        %v2282 = vsel %vm1973, %v2053, 0
        %2284 = vmatprep.subr.mxu0 0.0
        %2285 = vmatpush1.msra.mxu0 0.0
        %2286 = vmatprep.subr.mxu0 0.0
        %2287 = vmatpush1.msra.mxu0 0.0
        %2288 = vmatprep.subr.mxu0 0.0
        %2289 = vmatpush1.msra.mxu0 0.0
        %2290 = vmatprep.subr.mxu0 0.0
        %2291 = vmatpush1.msra.mxu0 0.0
        %2292 = vmatprep.subr.mxu0 0.0
        %2293 = vmatpush1.msra.mxu0 0.0
        %2294 = vmatprep.subr.mxu0 0.0
        %2295 = vmatpush1.msra.mxu0 0.0
        %2296 = vmatprep.subr.mxu0 0.0
        %2297 = vmatpush1.msra.mxu0 0.0
        %2298 = vmatprep.subr.mxu0 0.0
        %2299 = vmatpush1.msra.mxu0 0.0
        %2300 = vmatprep.subr.mxu0 0.0
        %2301 = vmatpush1.msra.mxu0 0.0
        %2302 = vmatprep.subr.mxu0 0.0
        %2303 = vmatpush1.msra.mxu0 0.0
        %2304 = vmatprep.subr.mxu0 0.0
        %2305 = vmatpush1.msra.mxu0 0.0
        %2306 = vmatprep.subr.mxu0 0.0
        %2307 = vmatpush1.msra.mxu0 0.0
        %2308 = vmatprep.subr.mxu0 0.0
        %2309 = vmatpush1.msra.mxu0 0.0
        %2310 = vmatprep.subr.mxu0 0.0
        %2311 = vmatpush1.msra.mxu0 0.0
        %2312 = vmatprep.subr.mxu0 0.0
        %2313 = vmatpush1.msra.mxu0 0.0
        %2314 = vmatprep.subr.mxu0 0.0
        %2315 = vmatpush1.msra.mxu0 %v1360
        %2316 = vmatprep.subr.mxu0 0.0
        %2317 = vmatpush2.msra.mxu0 0.0
        %2318 = vmatprep.subr.mxu0 0.0
        %2319 = vmatpush2.msra.mxu0 0.0
        %2320 = vmatprep.subr.mxu0 0.0
        %2321 = vmatpush2.msra.mxu0 0.0
        %2322 = vmatprep.subr.mxu0 0.0
        %2323 = vmatpush2.msra.mxu0 0.0
        %2324 = vmatprep.subr.mxu0 0.0
        %2325 = vmatpush2.msra.mxu0 0.0
        %2326 = vmatprep.subr.mxu0 0.0
        %2327 = vmatpush2.msra.mxu0 0.0
        %2328 = vmatprep.subr.mxu0 0.0
        %2329 = vmatpush2.msra.mxu0 0.0
        %2330 = vmatprep.subr.mxu0 0.0
        %2331 = vmatpush2.msra.mxu0 0.0
        %2332 = vmatprep.subr.mxu0 0.0
        %2333 = vmatpush2.msra.mxu0 0.0
        %2334 = vmatprep.subr.mxu0 0.0
        %2335 = vmatpush2.msra.mxu0 0.0
        %2336 = vmatprep.subr.mxu0 0.0
        %2337 = vmatpush2.msra.mxu0 0.0
        %2338 = vmatprep.subr.mxu0 0.0
        %2339 = vmatpush2.msra.mxu0 0.0
        %2340 = vmatprep.subr.mxu0 0.0
        %2341 = vmatpush2.msra.mxu0 0.0
        %2342 = vmatprep.subr.mxu0 0.0
        %2343 = vmatpush2.msra.mxu0 0.0
        %2344 = vmatprep.subr.mxu0 0.0
        %2345 = vmatpush2.msra.mxu0 0.0
        %2346 = vmatprep.subr.mxu0 0.0
        %2347 = vmatpush2.msra.mxu0 0.0
        %2348 = vmatprep.mubr.f32.mxu0 0.0
        %2349 = vmatmul.mubr.f32.gmra.mxu0 %v2282
        %v2350 = vpop.f32.mrf.mxu0
        %v2351 = vadd.f32 0.0, %v2350
        %v2352 = vpop.f32.mrf.mxu0
        %2353 = vdwg.mxu0
        %v2355 = vsel %vm1973, %v2055, 0
        %2357 = vmatprep.subr.mxu0 0.0
        %2358 = vmatpush1.msra.mxu0 0.0
        %2359 = vmatprep.subr.mxu0 0.0
        %2360 = vmatpush1.msra.mxu0 0.0
        %2361 = vmatprep.subr.mxu0 0.0
        %2362 = vmatpush1.msra.mxu0 0.0
        %2363 = vmatprep.subr.mxu0 0.0
        %2364 = vmatpush1.msra.mxu0 0.0
        %2365 = vmatprep.subr.mxu0 0.0
        %2366 = vmatpush1.msra.mxu0 0.0
        %2367 = vmatprep.subr.mxu0 0.0
        %2368 = vmatpush1.msra.mxu0 0.0
        %2369 = vmatprep.subr.mxu0 0.0
        %2370 = vmatpush1.msra.mxu0 0.0
        %2371 = vmatprep.subr.mxu0 0.0
        %2372 = vmatpush1.msra.mxu0 0.0
        %2373 = vmatprep.subr.mxu0 0.0
        %2374 = vmatpush1.msra.mxu0 0.0
        %2375 = vmatprep.subr.mxu0 0.0
        %2376 = vmatpush1.msra.mxu0 0.0
        %2377 = vmatprep.subr.mxu0 0.0
        %2378 = vmatpush1.msra.mxu0 0.0
        %2379 = vmatprep.subr.mxu0 0.0
        %2380 = vmatpush1.msra.mxu0 0.0
        %2381 = vmatprep.subr.mxu0 0.0
        %2382 = vmatpush1.msra.mxu0 0.0
        %2383 = vmatprep.subr.mxu0 0.0
        %2384 = vmatpush1.msra.mxu0 0.0
        %2385 = vmatprep.subr.mxu0 0.0
        %2386 = vmatpush1.msra.mxu0 0.0
        %2387 = vmatprep.subr.mxu0 0.0
        %2388 = vmatpush1.msra.mxu0 %v1361
        %2389 = vmatprep.subr.mxu0 0.0
        %2390 = vmatpush2.msra.mxu0 0.0
        %2391 = vmatprep.subr.mxu0 0.0
        %2392 = vmatpush2.msra.mxu0 0.0
        %2393 = vmatprep.subr.mxu0 0.0
        %2394 = vmatpush2.msra.mxu0 0.0
        %2395 = vmatprep.subr.mxu0 0.0
        %2396 = vmatpush2.msra.mxu0 0.0
        %2397 = vmatprep.subr.mxu0 0.0
        %2398 = vmatpush2.msra.mxu0 0.0
        %2399 = vmatprep.subr.mxu0 0.0
        %2400 = vmatpush2.msra.mxu0 0.0
        %2401 = vmatprep.subr.mxu0 0.0
        %2402 = vmatpush2.msra.mxu0 0.0
        %2403 = vmatprep.subr.mxu0 0.0
        %2404 = vmatpush2.msra.mxu0 0.0
        %2405 = vmatprep.subr.mxu0 0.0
        %2406 = vmatpush2.msra.mxu0 0.0
        %2407 = vmatprep.subr.mxu0 0.0
        %2408 = vmatpush2.msra.mxu0 0.0
        %2409 = vmatprep.subr.mxu0 0.0
        %2410 = vmatpush2.msra.mxu0 0.0
        %2411 = vmatprep.subr.mxu0 0.0
        %2412 = vmatpush2.msra.mxu0 0.0
        %2413 = vmatprep.subr.mxu0 0.0
        %2414 = vmatpush2.msra.mxu0 0.0
        %2415 = vmatprep.subr.mxu0 0.0
        %2416 = vmatpush2.msra.mxu0 0.0
        %2417 = vmatprep.subr.mxu0 0.0
        %2418 = vmatpush2.msra.mxu0 0.0
        %2419 = vmatprep.subr.mxu0 0.0
        %2420 = vmatpush2.msra.mxu0 0.0
        %2421 = vmatprep.mubr.f32.mxu0 0.0
        %2422 = vmatmul.mubr.f32.gmra.mxu0 %v2355
        %v2423 = vpop.f32.mrf.mxu0
        %v2424 = vadd.f32 0.0, %v2423
        %v2425 = vpop.f32.mrf.mxu0
        %2426 = vdwg.mxu0
        %v2428 = vsel %vm1973, %v2057, 0
        %2430 = vmatprep.subr.mxu0 0.0
        %2431 = vmatpush1.msra.mxu0 0.0
        %2432 = vmatprep.subr.mxu0 0.0
        %2433 = vmatpush1.msra.mxu0 0.0
        %2434 = vmatprep.subr.mxu0 0.0
        %2435 = vmatpush1.msra.mxu0 0.0
        %2436 = vmatprep.subr.mxu0 0.0
        %2437 = vmatpush1.msra.mxu0 0.0
        %2438 = vmatprep.subr.mxu0 0.0
        %2439 = vmatpush1.msra.mxu0 0.0
        %2440 = vmatprep.subr.mxu0 0.0
        %2441 = vmatpush1.msra.mxu0 0.0
        %2442 = vmatprep.subr.mxu0 0.0
        %2443 = vmatpush1.msra.mxu0 0.0
        %2444 = vmatprep.subr.mxu0 0.0
        %2445 = vmatpush1.msra.mxu0 0.0
        %2446 = vmatprep.subr.mxu0 0.0
        %2447 = vmatpush1.msra.mxu0 0.0
        %2448 = vmatprep.subr.mxu0 0.0
        %2449 = vmatpush1.msra.mxu0 0.0
        %2450 = vmatprep.subr.mxu0 0.0
        %2451 = vmatpush1.msra.mxu0 0.0
        %2452 = vmatprep.subr.mxu0 0.0
        %2453 = vmatpush1.msra.mxu0 0.0
        %2454 = vmatprep.subr.mxu0 0.0
        %2455 = vmatpush1.msra.mxu0 0.0
        %2456 = vmatprep.subr.mxu0 0.0
        %2457 = vmatpush1.msra.mxu0 0.0
        %2458 = vmatprep.subr.mxu0 0.0
        %2459 = vmatpush1.msra.mxu0 0.0
        %2460 = vmatprep.subr.mxu0 0.0
        %2461 = vmatpush1.msra.mxu0 %v1362
        %2462 = vmatprep.subr.mxu0 0.0
        %2463 = vmatpush2.msra.mxu0 0.0
        %2464 = vmatprep.subr.mxu0 0.0
        %2465 = vmatpush2.msra.mxu0 0.0
        %2466 = vmatprep.subr.mxu0 0.0
        %2467 = vmatpush2.msra.mxu0 0.0
        %2468 = vmatprep.subr.mxu0 0.0
        %2469 = vmatpush2.msra.mxu0 0.0
        %2470 = vmatprep.subr.mxu0 0.0
        %2471 = vmatpush2.msra.mxu0 0.0
        %2472 = vmatprep.subr.mxu0 0.0
        %2473 = vmatpush2.msra.mxu0 0.0
        %2474 = vmatprep.subr.mxu0 0.0
        %2475 = vmatpush2.msra.mxu0 0.0
        %2476 = vmatprep.subr.mxu0 0.0
        %2477 = vmatpush2.msra.mxu0 0.0
        %2478 = vmatprep.subr.mxu0 0.0
        %2479 = vmatpush2.msra.mxu0 0.0
        %2480 = vmatprep.subr.mxu0 0.0
        %2481 = vmatpush2.msra.mxu0 0.0
        %2482 = vmatprep.subr.mxu0 0.0
        %2483 = vmatpush2.msra.mxu0 0.0
        %2484 = vmatprep.subr.mxu0 0.0
        %2485 = vmatpush2.msra.mxu0 0.0
        %2486 = vmatprep.subr.mxu0 0.0
        %2487 = vmatpush2.msra.mxu0 0.0
        %2488 = vmatprep.subr.mxu0 0.0
        %2489 = vmatpush2.msra.mxu0 0.0
        %2490 = vmatprep.subr.mxu0 0.0
        %2491 = vmatpush2.msra.mxu0 0.0
        %2492 = vmatprep.subr.mxu0 0.0
        %2493 = vmatpush2.msra.mxu0 0.0
        %2494 = vmatprep.mubr.f32.mxu0 0.0
        %2495 = vmatmul.mubr.f32.gmra.mxu0 %v2428
        %v2496 = vpop.f32.mrf.mxu0
        %v2497 = vadd.f32 0.0, %v2496
        %v2498 = vpop.f32.mrf.mxu0
        %2499 = vdwg.mxu0
        %v2501 = vsel %vm1973, %v2059, 0
        %2503 = vmatprep.subr.mxu0 0.0
        %2504 = vmatpush1.msra.mxu0 0.0
        %2505 = vmatprep.subr.mxu0 0.0
        %2506 = vmatpush1.msra.mxu0 0.0
        %2507 = vmatprep.subr.mxu0 0.0
        %2508 = vmatpush1.msra.mxu0 0.0
        %2509 = vmatprep.subr.mxu0 0.0
        %2510 = vmatpush1.msra.mxu0 0.0
        %2511 = vmatprep.subr.mxu0 0.0
        %2512 = vmatpush1.msra.mxu0 0.0
        %2513 = vmatprep.subr.mxu0 0.0
        %2514 = vmatpush1.msra.mxu0 0.0
        %2515 = vmatprep.subr.mxu0 0.0
        %2516 = vmatpush1.msra.mxu0 0.0
        %2517 = vmatprep.subr.mxu0 0.0
        %2518 = vmatpush1.msra.mxu0 0.0
        %2519 = vmatprep.subr.mxu0 0.0
        %2520 = vmatpush1.msra.mxu0 0.0
        %2521 = vmatprep.subr.mxu0 0.0
        %2522 = vmatpush1.msra.mxu0 0.0
        %2523 = vmatprep.subr.mxu0 0.0
        %2524 = vmatpush1.msra.mxu0 0.0
        %2525 = vmatprep.subr.mxu0 0.0
        %2526 = vmatpush1.msra.mxu0 0.0
        %2527 = vmatprep.subr.mxu0 0.0
        %2528 = vmatpush1.msra.mxu0 0.0
        %2529 = vmatprep.subr.mxu0 0.0
        %2530 = vmatpush1.msra.mxu0 0.0
        %2531 = vmatprep.subr.mxu0 0.0
        %2532 = vmatpush1.msra.mxu0 0.0
        %2533 = vmatprep.subr.mxu0 0.0
        %2534 = vmatpush1.msra.mxu0 %v1363
        %2535 = vmatprep.subr.mxu0 0.0
        %2536 = vmatpush2.msra.mxu0 0.0
        %2537 = vmatprep.subr.mxu0 0.0
        %2538 = vmatpush2.msra.mxu0 0.0
        %2539 = vmatprep.subr.mxu0 0.0
        %2540 = vmatpush2.msra.mxu0 0.0
        %2541 = vmatprep.subr.mxu0 0.0
        %2542 = vmatpush2.msra.mxu0 0.0
        %2543 = vmatprep.subr.mxu0 0.0
        %2544 = vmatpush2.msra.mxu0 0.0
        %2545 = vmatprep.subr.mxu0 0.0
        %2546 = vmatpush2.msra.mxu0 0.0
        %2547 = vmatprep.subr.mxu0 0.0
        %2548 = vmatpush2.msra.mxu0 0.0
        %2549 = vmatprep.subr.mxu0 0.0
        %2550 = vmatpush2.msra.mxu0 0.0
        %2551 = vmatprep.subr.mxu0 0.0
        %2552 = vmatpush2.msra.mxu0 0.0
        %2553 = vmatprep.subr.mxu0 0.0
        %2554 = vmatpush2.msra.mxu0 0.0
        %2555 = vmatprep.subr.mxu0 0.0
        %2556 = vmatpush2.msra.mxu0 0.0
        %2557 = vmatprep.subr.mxu0 0.0
        %2558 = vmatpush2.msra.mxu0 0.0
        %2559 = vmatprep.subr.mxu0 0.0
        %2560 = vmatpush2.msra.mxu0 0.0
        %2561 = vmatprep.subr.mxu0 0.0
        %2562 = vmatpush2.msra.mxu0 0.0
        %2563 = vmatprep.subr.mxu0 0.0
        %2564 = vmatpush2.msra.mxu0 0.0
        %2565 = vmatprep.subr.mxu0 0.0
        %2566 = vmatpush2.msra.mxu0 0.0
        %2567 = vmatprep.mubr.f32.mxu0 0.0
        %2568 = vmatmul.mubr.f32.gmra.mxu0 %v2501
        %v2569 = vpop.f32.mrf.mxu0
        %v2570 = vadd.f32 0.0, %v2569
        %v2571 = vpop.f32.mrf.mxu0
        %2572 = vdwg.mxu0
        %v2574 = vsel %vm1973, %v2061, 0
        %2576 = vmatprep.subr.mxu0 0.0
        %2577 = vmatpush1.msra.mxu0 0.0
        %2578 = vmatprep.subr.mxu0 0.0
        %2579 = vmatpush1.msra.mxu0 0.0
        %2580 = vmatprep.subr.mxu0 0.0
        %2581 = vmatpush1.msra.mxu0 0.0
        %2582 = vmatprep.subr.mxu0 0.0
        %2583 = vmatpush1.msra.mxu0 0.0
        %2584 = vmatprep.subr.mxu0 0.0
        %2585 = vmatpush1.msra.mxu0 0.0
        %2586 = vmatprep.subr.mxu0 0.0
        %2587 = vmatpush1.msra.mxu0 0.0
        %2588 = vmatprep.subr.mxu0 0.0
        %2589 = vmatpush1.msra.mxu0 0.0
        %2590 = vmatprep.subr.mxu0 0.0
        %2591 = vmatpush1.msra.mxu0 0.0
        %2592 = vmatprep.subr.mxu0 0.0
        %2593 = vmatpush1.msra.mxu0 0.0
        %2594 = vmatprep.subr.mxu0 0.0
        %2595 = vmatpush1.msra.mxu0 0.0
        %2596 = vmatprep.subr.mxu0 0.0
        %2597 = vmatpush1.msra.mxu0 0.0
        %2598 = vmatprep.subr.mxu0 0.0
        %2599 = vmatpush1.msra.mxu0 0.0
        %2600 = vmatprep.subr.mxu0 0.0
        %2601 = vmatpush1.msra.mxu0 0.0
        %2602 = vmatprep.subr.mxu0 0.0
        %2603 = vmatpush1.msra.mxu0 0.0
        %2604 = vmatprep.subr.mxu0 0.0
        %2605 = vmatpush1.msra.mxu0 0.0
        %2606 = vmatprep.subr.mxu0 0.0
        %2607 = vmatpush1.msra.mxu0 %v1364
        %2608 = vmatprep.subr.mxu0 0.0
        %2609 = vmatpush2.msra.mxu0 0.0
        %2610 = vmatprep.subr.mxu0 0.0
        %2611 = vmatpush2.msra.mxu0 0.0
        %2612 = vmatprep.subr.mxu0 0.0
        %2613 = vmatpush2.msra.mxu0 0.0
        %2614 = vmatprep.subr.mxu0 0.0
        %2615 = vmatpush2.msra.mxu0 0.0
        %2616 = vmatprep.subr.mxu0 0.0
        %2617 = vmatpush2.msra.mxu0 0.0
        %2618 = vmatprep.subr.mxu0 0.0
        %2619 = vmatpush2.msra.mxu0 0.0
        %2620 = vmatprep.subr.mxu0 0.0
        %2621 = vmatpush2.msra.mxu0 0.0
        %2622 = vmatprep.subr.mxu0 0.0
        %2623 = vmatpush2.msra.mxu0 0.0
        %2624 = vmatprep.subr.mxu0 0.0
        %2625 = vmatpush2.msra.mxu0 0.0
        %2626 = vmatprep.subr.mxu0 0.0
        %2627 = vmatpush2.msra.mxu0 0.0
        %2628 = vmatprep.subr.mxu0 0.0
        %2629 = vmatpush2.msra.mxu0 0.0
        %2630 = vmatprep.subr.mxu0 0.0
        %2631 = vmatpush2.msra.mxu0 0.0
        %2632 = vmatprep.subr.mxu0 0.0
        %2633 = vmatpush2.msra.mxu0 0.0
        %2634 = vmatprep.subr.mxu0 0.0
        %2635 = vmatpush2.msra.mxu0 0.0
        %2636 = vmatprep.subr.mxu0 0.0
        %2637 = vmatpush2.msra.mxu0 0.0
        %2638 = vmatprep.subr.mxu0 0.0
        %2639 = vmatpush2.msra.mxu0 0.0
        %2640 = vmatprep.mubr.f32.mxu0 0.0
        %2641 = vmatmul.mubr.f32.gmra.mxu0 %v2574
        %v2642 = vpop.f32.mrf.mxu0
        %v2643 = vadd.f32 0.0, %v2642
        %v2644 = vpop.f32.mrf.mxu0
        %2645 = vdwg.mxu0
        %v2646 = vcombine.low %v2132, %v2278
        %v2647 = vcombine.high %v2132, %v2278
        %v2649 = vunpack.c.l.s4 1983009808
        %v2650 = vunpack.c.0.s8 %v2649
        %v2651 = vlaneseq
        %v2652 = vshrl.u32 %v2651, 7
        %v2653 = vsub.s32 %v2650, %v2652
        %v2654 = vrot.slane %v2646, %v2653
        %v2656 = vunpack.c.l.s4 1983009808
        %v2657 = vunpack.c.0.s8 %v2656
        %v2658 = vlaneseq
        %v2659 = vshrl.u32 %v2658, 7
        %v2660 = vsub.s32 %v2657, %v2659
        %v2661 = vrot.slane %v2647, %v2660
        %v2662 = vcombine.low %v2205, %v2351
        %v2663 = vcombine.high %v2205, %v2351
        %v2665 = vunpack.c.l.s4 1983009808
        %v2666 = vunpack.c.0.s8 %v2665
        %v2667 = vlaneseq
        %v2668 = vshrl.u32 %v2667, 7
        %v2669 = vsub.s32 %v2666, %v2668
        %v2670 = vrot.slane %v2662, %v2669
        %v2672 = vunpack.c.l.s4 1983009808
        %v2673 = vunpack.c.0.s8 %v2672
        %v2674 = vlaneseq
        %v2675 = vshrl.u32 %v2674, 7
        %v2676 = vsub.s32 %v2673, %v2675
        %v2677 = vrot.slane %v2663, %v2676
        %v2678 = vcombine.low %v2424, %v2570
        %v2679 = vcombine.high %v2424, %v2570
        %v2681 = vunpack.c.l.s4 1983009808
        %v2682 = vunpack.c.0.s8 %v2681
        %v2683 = vlaneseq
        %v2684 = vshrl.u32 %v2683, 7
        %v2685 = vsub.s32 %v2682, %v2684
        %v2686 = vrot.slane %v2678, %v2685
        %v2688 = vunpack.c.l.s4 1983009808
        %v2689 = vunpack.c.0.s8 %v2688
        %v2690 = vlaneseq
        %v2691 = vshrl.u32 %v2690, 7
        %v2692 = vsub.s32 %v2689, %v2691
        %v2693 = vrot.slane %v2679, %v2692
        %v2694 = vcombine.low %v2497, %v2643
        %v2695 = vcombine.high %v2497, %v2643
        %v2697 = vunpack.c.l.s4 1983009808
        %v2698 = vunpack.c.0.s8 %v2697
        %v2699 = vlaneseq
        %v2700 = vshrl.u32 %v2699, 7
        %v2701 = vsub.s32 %v2698, %v2700
        %v2702 = vrot.slane %v2694, %v2701
        %v2704 = vunpack.c.l.s4 1983009808
        %v2705 = vunpack.c.0.s8 %v2704
        %v2706 = vlaneseq
        %v2707 = vshrl.u32 %v2706, 7
        %v2708 = vsub.s32 %v2705, %v2707
        %v2709 = vrot.slane %v2695, %v2708
        %v2710 = vcombine.low %v2654, %v2670
        %v2711 = vcombine.high %v2654, %v2670
        %v2713 = vunpack.c.l.s4 1934713408
        %v2714 = vunpack.c.0.s8 %v2713
        %v2715 = vlaneseq
        %v2716 = vshrl.u32 %v2715, 7
        %v2717 = vsub.s32 %v2714, %v2716
        %v2718 = vrot.slane %v2710, %v2717
        %v2720 = vunpack.c.l.s4 1934713408
        %v2721 = vunpack.c.0.s8 %v2720
        %v2722 = vlaneseq
        %v2723 = vshrl.u32 %v2722, 7
        %v2724 = vsub.s32 %v2721, %v2723
        %v2725 = vrot.slane %v2711, %v2724
        %v2726 = vcombine.low %v2661, %v2677
        %v2727 = vcombine.high %v2661, %v2677
        %v2729 = vunpack.c.l.s4 1934713408
        %v2730 = vunpack.c.0.s8 %v2729
        %v2731 = vlaneseq
        %v2732 = vshrl.u32 %v2731, 7
        %v2733 = vsub.s32 %v2730, %v2732
        %v2734 = vrot.slane %v2726, %v2733
        %v2736 = vunpack.c.l.s4 1934713408
        %v2737 = vunpack.c.0.s8 %v2736
        %v2738 = vlaneseq
        %v2739 = vshrl.u32 %v2738, 7
        %v2740 = vsub.s32 %v2737, %v2739
        %v2741 = vrot.slane %v2727, %v2740
        %v2742 = vcombine.low %v2686, %v2702
        %v2743 = vcombine.high %v2686, %v2702
        %v2745 = vunpack.c.l.s4 1934713408
        %v2746 = vunpack.c.0.s8 %v2745
        %v2747 = vlaneseq
        %v2748 = vshrl.u32 %v2747, 7
        %v2749 = vsub.s32 %v2746, %v2748
        %v2750 = vrot.slane %v2742, %v2749
        %v2752 = vunpack.c.l.s4 1934713408
        %v2753 = vunpack.c.0.s8 %v2752
        %v2754 = vlaneseq
        %v2755 = vshrl.u32 %v2754, 7
        %v2756 = vsub.s32 %v2753, %v2755
        %v2757 = vrot.slane %v2743, %v2756
        %v2758 = vcombine.low %v2693, %v2709
        %v2759 = vcombine.high %v2693, %v2709
        %v2761 = vunpack.c.l.s4 1934713408
        %v2762 = vunpack.c.0.s8 %v2761
        %v2763 = vlaneseq
        %v2764 = vshrl.u32 %v2763, 7
        %v2765 = vsub.s32 %v2762, %v2764
        %v2766 = vrot.slane %v2758, %v2765
        %v2768 = vunpack.c.l.s4 1934713408
        %v2769 = vunpack.c.0.s8 %v2768
        %v2770 = vlaneseq
        %v2771 = vshrl.u32 %v2770, 7
        %v2772 = vsub.s32 %v2769, %v2771
        %v2773 = vrot.slane %v2759, %v2772
        %v2774 = vcombine.low %v2718, %v2750
        %v2775 = vcombine.high %v2718, %v2750
        %v2776 = vcombine.low %v2725, %v2757
        %v2777 = vcombine.high %v2725, %v2757
        %v2778 = vcombine.low %v2734, %v2766
        %v2779 = vcombine.high %v2734, %v2766
        %v2780 = vcombine.low %v2741, %v2773
        %v2781 = vcombine.high %v2741, %v2773
        %v2782 = vcombine.low %v2774, %v2776
        %v2783 = vcombine.high %v2774, %v2776
        %v2785 = vunpack.c.l.s4 1983009808
        %v2786 = vunpack.c.0.s8 %v2785
        %v2787 = vlaneseq
        %v2788 = vshrl.u32 %v2787, 7
        %v2789 = vsub.s32 %v2786, %v2788
        %v2790 = vrot.slane %v2782, %v2789
        %v2792 = vunpack.c.l.s4 1983009808
        %v2793 = vunpack.c.0.s8 %v2792
        %v2794 = vlaneseq
        %v2795 = vshrl.u32 %v2794, 7
        %v2796 = vsub.s32 %v2793, %v2795
        %v2797 = vrot.slane %v2783, %v2796
        %v2798 = vcombine.low %v2775, %v2777
        %v2799 = vcombine.high %v2775, %v2777
        %v2801 = vunpack.c.l.s4 1983009808
        %v2802 = vunpack.c.0.s8 %v2801
        %v2803 = vlaneseq
        %v2804 = vshrl.u32 %v2803, 7
        %v2805 = vsub.s32 %v2802, %v2804
        %v2806 = vrot.slane %v2798, %v2805
        %v2808 = vunpack.c.l.s4 1983009808
        %v2809 = vunpack.c.0.s8 %v2808
        %v2810 = vlaneseq
        %v2811 = vshrl.u32 %v2810, 7
        %v2812 = vsub.s32 %v2809, %v2811
        %v2813 = vrot.slane %v2799, %v2812
        %v2814 = vcombine.low %v2778, %v2780
        %v2815 = vcombine.high %v2778, %v2780
        %v2817 = vunpack.c.l.s4 1983009808
        %v2818 = vunpack.c.0.s8 %v2817
        %v2819 = vlaneseq
        %v2820 = vshrl.u32 %v2819, 7
        %v2821 = vsub.s32 %v2818, %v2820
        %v2822 = vrot.slane %v2814, %v2821
        %v2824 = vunpack.c.l.s4 1983009808
        %v2825 = vunpack.c.0.s8 %v2824
        %v2826 = vlaneseq
        %v2827 = vshrl.u32 %v2826, 7
        %v2828 = vsub.s32 %v2825, %v2827
        %v2829 = vrot.slane %v2815, %v2828
        %v2830 = vcombine.low %v2779, %v2781
        %v2831 = vcombine.high %v2779, %v2781
        %v2833 = vunpack.c.l.s4 1983009808
        %v2834 = vunpack.c.0.s8 %v2833
        %v2835 = vlaneseq
        %v2836 = vshrl.u32 %v2835, 7
        %v2837 = vsub.s32 %v2834, %v2836
        %v2838 = vrot.slane %v2830, %v2837
        %v2840 = vunpack.c.l.s4 1983009808
        %v2841 = vunpack.c.0.s8 %v2840
        %v2842 = vlaneseq
        %v2843 = vshrl.u32 %v2842, 7
        %v2844 = vsub.s32 %v2841, %v2843
        %v2845 = vrot.slane %v2831, %v2844
        %v2846 = vcombine.low %v2790, %v2806
        %v2847 = vcombine.high %v2790, %v2806
        %v2849 = vunpack.c.l.s4 1934713408
        %v2850 = vunpack.c.0.s8 %v2849
        %v2851 = vlaneseq
        %v2852 = vshrl.u32 %v2851, 7
        %v2853 = vsub.s32 %v2850, %v2852
        %v2854 = vrot.slane %v2846, %v2853
        %v2856 = vunpack.c.l.s4 1934713408
        %v2857 = vunpack.c.0.s8 %v2856
        %v2858 = vlaneseq
        %v2859 = vshrl.u32 %v2858, 7
        %v2860 = vsub.s32 %v2857, %v2859
        %v2861 = vrot.slane %v2847, %v2860
        %v2862 = vcombine.low %v2797, %v2813
        %v2863 = vcombine.high %v2797, %v2813
        %v2865 = vunpack.c.l.s4 1934713408
        %v2866 = vunpack.c.0.s8 %v2865
        %v2867 = vlaneseq
        %v2868 = vshrl.u32 %v2867, 7
        %v2869 = vsub.s32 %v2866, %v2868
        %v2870 = vrot.slane %v2862, %v2869
        %v2872 = vunpack.c.l.s4 1934713408
        %v2873 = vunpack.c.0.s8 %v2872
        %v2874 = vlaneseq
        %v2875 = vshrl.u32 %v2874, 7
        %v2876 = vsub.s32 %v2873, %v2875
        %v2877 = vrot.slane %v2863, %v2876
        %v2878 = vcombine.low %v2822, %v2838
        %v2879 = vcombine.high %v2822, %v2838
        %v2881 = vunpack.c.l.s4 1934713408
        %v2882 = vunpack.c.0.s8 %v2881
        %v2883 = vlaneseq
        %v2884 = vshrl.u32 %v2883, 7
        %v2885 = vsub.s32 %v2882, %v2884
        %v2886 = vrot.slane %v2878, %v2885
        %v2888 = vunpack.c.l.s4 1934713408
        %v2889 = vunpack.c.0.s8 %v2888
        %v2890 = vlaneseq
        %v2891 = vshrl.u32 %v2890, 7
        %v2892 = vsub.s32 %v2889, %v2891
        %v2893 = vrot.slane %v2879, %v2892
        %v2894 = vcombine.low %v2829, %v2845
        %v2895 = vcombine.high %v2829, %v2845
        %v2897 = vunpack.c.l.s4 1934713408
        %v2898 = vunpack.c.0.s8 %v2897
        %v2899 = vlaneseq
        %v2900 = vshrl.u32 %v2899, 7
        %v2901 = vsub.s32 %v2898, %v2900
        %v2902 = vrot.slane %v2894, %v2901
        %v2904 = vunpack.c.l.s4 1934713408
        %v2905 = vunpack.c.0.s8 %v2904
        %v2906 = vlaneseq
        %v2907 = vshrl.u32 %v2906, 7
        %v2908 = vsub.s32 %v2905, %v2907
        %v2909 = vrot.slane %v2895, %v2908
        %v2910 = vcombine.low %v2854, %v2886
        %v2911 = vcombine.high %v2854, %v2886
        %v2912 = vcombine.low %v2861, %v2893
        %v2913 = vcombine.high %v2861, %v2893
        %v2914 = vcombine.low %v2870, %v2902
        %v2915 = vcombine.high %v2870, %v2902
        %v2916 = vcombine.low %v2877, %v2909
        %v2917 = vcombine.high %v2877, %v2909
        %2919 = vrot.lane.b32.xlu0 %v2911, 32
        %v2920 = vpop.permute.xlu0 %2919
        %2923 = vrot.lane.b32.xlu0 %v2912, 64
        %v2924 = vpop.permute.xlu0 %2923
        %2927 = vrot.lane.b32.xlu0 %v2913, 96
        %v2928 = vpop.permute.xlu0 %2927
        %2931 = vrot.lane.b32.xlu0 %v2915, 32
        %v2932 = vpop.permute.xlu0 %2931
        %2935 = vrot.lane.b32.xlu0 %v2916, 64
        %v2936 = vpop.permute.xlu0 %2935
        %2939 = vrot.lane.b32.xlu0 %v2917, 96
        %v2940 = vpop.permute.xlu0 %2939
        %v2942 = vsel %vm256, %v2910, %v2920
        %vm2943 = vcmask 523264
        %v2944 = vsel %vm2943, %v2942, %v2924
        %vm2945 = vcmask 785408
        %v2946 = vsel %vm2945, %v2944, %v2928
        %v2947 = vsel %vm256, %v2914, %v2932
        %v2948 = vsel %vm2943, %v2947, %v2936
        %v2949 = vsel %vm2945, %v2948, %v2940
        %v2950 = vld [vmem:[%s4] sm:$0xff]
        %v2951 = vld [vmem:[%s4 + $0x8] sm:$0xff]
        %v2952 = vld [vmem:[%s4 + $0x10] sm:$0xff]
        %v2953 = vld [vmem:[%s4 + $0x18] sm:$0xff]
        %v2954 = vld [vmem:[%s4 + $0x20] sm:$0xff]
        %v2955 = vld [vmem:[%s4 + $0x28] sm:$0xff]
        %v2956 = vld [vmem:[%s4 + $0x30] sm:$0xff]
        %v2957 = vld [vmem:[%s4 + $0x38] sm:$0xff]
        %v2958 = vld [vmem:[%s4 + $0x40] sm:$0xff]
        %v2959 = vld [vmem:[%s4 + $0x48] sm:$0xff]
        %v2960 = vld [vmem:[%s4 + $0x50] sm:$0xff]
        %v2961 = vld [vmem:[%s4 + $0x58] sm:$0xff]
        %v2962 = vld [vmem:[%s4 + $0x60] sm:$0xff]
        %v2963 = vld [vmem:[%s4 + $0x68] sm:$0xff]
        %v2964 = vld [vmem:[%s4 + $0x70] sm:$0xff]
        %v2965 = vld [vmem:[%s4 + $0x78] sm:$0xff]
        %v2966 = vld [vmem:[%s4 + $0x80] sm:$0xff]
        %v2967 = vld [vmem:[%s4 + $0x88] sm:$0xff]
        %v2968 = vld [vmem:[%s4 + $0x90] sm:$0xff]
        %v2969 = vld [vmem:[%s4 + $0x98] sm:$0xff]
        %v2970 = vld [vmem:[%s4 + $0xa0] sm:$0xff]
        %v2971 = vld [vmem:[%s4 + $0xa8] sm:$0xff]
        %v2972 = vld [vmem:[%s4 + $0xb0] sm:$0xff]
        %v2973 = vld [vmem:[%s4 + $0xb8] sm:$0xff]
        %v2974 = vld [vmem:[%s4 + $0xc0] sm:$0xff]
        %v2975 = vld [vmem:[%s4 + $0xc8] sm:$0xff]
        %v2976 = vld [vmem:[%s4 + $0xd0] sm:$0xff]
        %v2977 = vld [vmem:[%s4 + $0xd8] sm:$0xff]
        %v2978 = vld [vmem:[%s4 + $0xe0] sm:$0xff]
        %v2979 = vld [vmem:[%s4 + $0xe8] sm:$0xff]
        %v2980 = vld [vmem:[%s4 + $0xf0] sm:$0xff]
        %v2981 = vld [vmem:[%s4 + $0xf8] sm:$0xff]
        %v2982 = vld [vmem:[%s5] sm:$0x1]
        %v2984 = vlaneseq
        %v2985 = vshrl.u32 %v2984, 7
        %v2986 = vsub.s32 0, %v2985
        %v2987 = vrot.slane %v2982, %v2986
        %2989 = vmatprep.subr.mxu0 0.0
        %2990 = vmatpush1.msra.mxu0 %v2965
        %2991 = vmatprep.subr.mxu0 0.0
        %2992 = vmatpush1.msra.mxu0 %v2964
        %2993 = vmatprep.subr.mxu0 0.0
        %2994 = vmatpush1.msra.mxu0 %v2963
        %2995 = vmatprep.subr.mxu0 0.0
        %2996 = vmatpush1.msra.mxu0 %v2962
        %2997 = vmatprep.subr.mxu0 0.0
        %2998 = vmatpush1.msra.mxu0 %v2961
        %2999 = vmatprep.subr.mxu0 0.0
        %3000 = vmatpush1.msra.mxu0 %v2960
        %3001 = vmatprep.subr.mxu0 0.0
        %3002 = vmatpush1.msra.mxu0 %v2959
        %3003 = vmatprep.subr.mxu0 0.0
        %3004 = vmatpush1.msra.mxu0 %v2958
        %3005 = vmatprep.subr.mxu0 0.0
        %3006 = vmatpush1.msra.mxu0 %v2957
        %3007 = vmatprep.subr.mxu0 0.0
        %3008 = vmatpush1.msra.mxu0 %v2956
        %3009 = vmatprep.subr.mxu0 0.0
        %3010 = vmatpush1.msra.mxu0 %v2955
        %3011 = vmatprep.subr.mxu0 0.0
        %3012 = vmatpush1.msra.mxu0 %v2954
        %3013 = vmatprep.subr.mxu0 0.0
        %3014 = vmatpush1.msra.mxu0 %v2953
        %3015 = vmatprep.subr.mxu0 0.0
        %3016 = vmatpush1.msra.mxu0 %v2952
        %3017 = vmatprep.subr.mxu0 0.0
        %3018 = vmatpush1.msra.mxu0 %v2951
        %3019 = vmatprep.subr.mxu0 0.0
        %3020 = vmatpush1.msra.mxu0 %v2950
        %3021 = vmatprep.subr.mxu0 0.0
        %3022 = vmatpush2.msra.mxu0 %v2981
        %3023 = vmatprep.subr.mxu0 0.0
        %3024 = vmatpush2.msra.mxu0 %v2980
        %3025 = vmatprep.subr.mxu0 0.0
        %3026 = vmatpush2.msra.mxu0 %v2979
        %3027 = vmatprep.subr.mxu0 0.0
        %3028 = vmatpush2.msra.mxu0 %v2978
        %3029 = vmatprep.subr.mxu0 0.0
        %3030 = vmatpush2.msra.mxu0 %v2977
        %3031 = vmatprep.subr.mxu0 0.0
        %3032 = vmatpush2.msra.mxu0 %v2976
        %3033 = vmatprep.subr.mxu0 0.0
        %3034 = vmatpush2.msra.mxu0 %v2975
        %3035 = vmatprep.subr.mxu0 0.0
        %3036 = vmatpush2.msra.mxu0 %v2974
        %3037 = vmatprep.subr.mxu0 0.0
        %3038 = vmatpush2.msra.mxu0 %v2973
        %3039 = vmatprep.subr.mxu0 0.0
        %3040 = vmatpush2.msra.mxu0 %v2972
        %3041 = vmatprep.subr.mxu0 0.0
        %3042 = vmatpush2.msra.mxu0 %v2971
        %3043 = vmatprep.subr.mxu0 0.0
        %3044 = vmatpush2.msra.mxu0 %v2970
        %3045 = vmatprep.subr.mxu0 0.0
        %3046 = vmatpush2.msra.mxu0 %v2969
        %3047 = vmatprep.subr.mxu0 0.0
        %3048 = vmatpush2.msra.mxu0 %v2968
        %3049 = vmatprep.subr.mxu0 0.0
        %3050 = vmatpush2.msra.mxu0 %v2967
        %3051 = vmatprep.subr.mxu0 0.0
        %3052 = vmatpush2.msra.mxu0 %v2966
        %3053 = vmatprep.mubr.f32.mxu0 %v2949
        %3054 = vmatmul.mubr.f32.gmra.mxu0 %v2946
        %v3055 = vpop.f32.mrf.mxu0
        %v3056 = vadd.f32 %v2987, %v3055
        %v3057 = vpop.f32.mrf.mxu0
        %3058 = vdwg.mxu0
        %3059 = vst.msk [vmem:[%s242] sm:$0xff] %vm256, %v3056
        %s3060 = sand.u32 %s159, 1
        %s3061 = scalar_lea.sflag [#allocation3], %s3060
        %s3062 = sand.u32 %s159, 1
        %s3063 = smul.addr %s3062, 8
        %s3064 = scalar_lea.vmem [#allocation2], %s3063
        // Predicated region
        $region45: #{tpu_custom_call.1} parent=43 // pred_check
          %p3065 = pneg %p169
        $region46: #{tpu_custom_call.1} parent=43 // pred_check_branch
          %3067 = sbr.rel (%p3065) target = $region48
        $region47: #{tpu_custom_call.1} parent=43 // pred_region
          %s3069 = ssub.s32 128, 128
          %3070 = vsyncadd %s3061, %s3069
          %s3071 = smul.addr %s20, 128
          %s3072 = scalar_lea.hbm %s6, %s3071
          %s3074 = sshll.u32 %s3064, 4
          %s3075 = int_to_ptr.vmem [resolvable:$true] %s3074
          %3077 = dma.vmem_to_hbm [thread:$0]  %s3075, 128, %s3072, %s3061
        $region48: #{tpu_custom_call.1} parent=43 // pred_fallthru
          _
      $region44: #{tpu_custom_call.1} parent=5 // pred_fallthru
        _
      %p3078 = scmp.le.s32.totalorder 2, %s15
      // Predicated region
      $region49: #{tpu_custom_call.1} parent=5 // pred_check
        %p3079 = pneg %p3078
      $region50: #{tpu_custom_call.1} parent=5 // pred_check_branch
        %3081 = sbr.rel (%p3079) target = $region52
      $region51: #{tpu_custom_call.1} parent=5 // pred_region
        %s3082 = ssub.s32 %s15, 2
        // Predicated region
        $region53: #{tpu_custom_call.1} parent=51 // pred_check
          %p3083 = pneg %p175
        $region54: #{tpu_custom_call.1} parent=51 // pred_check_branch
          %3085 = sbr.rel (%p3083) target = $region56
        $region55: #{tpu_custom_call.1} parent=51 // pred_region
          %s3086 = sand.u32 %s160, 1
          %s3087 = scalar_lea.sflag [#allocation3], %s3086
          %s3088 = sand.u32 %s160, 1
          %s3089 = smul.addr %s3088, 8
          %s3090 = scalar_lea.vmem [#allocation2], %s3089
          %3091 = dma.done %s3087, 128
        $region56: #{tpu_custom_call.1} parent=51 // pred_fallthru
          _
      $region52: #{tpu_custom_call.1} parent=5 // pred_fallthru
        _
    $region6: #{tpu_custom_call.1} parent=1 // loop_footer
      %s19 = sadd.s32 1, %s15
    $region7: #{tpu_custom_call.1} parent=1 // loop_footer_branch
      %14 = sbr.rel target = $region3
    $region8: #{tpu_custom_call.1} parent=1 // loop_exit
      _
    %3092 = vsyncpa [#allocation3], 1
    %s3093 = scalar_lea.sflag [#allocation3], 1
    %3094 = vsyncpa %s3093, 1

</llo_original>
